<compile_context>
chip_gen: v5e
topology: v5e:2x2
jax: 0.10.0
libtpu: 0.0.40
codegen_flags: <defaults>
</compile_context>

<pallas_src>
import functools

import jax
import jax.numpy as jnp
from jax.experimental import pallas as pl
from jax.experimental.pallas import tpu as pltpu

H1 = 400          # torch hidden sizes
H2 = 300
OUT = 1

LANE = 128
H1P = 512         # 400 padded up to a multiple of 128
H2P = 384         # 300 padded up to a multiple of 128


def _round_up(n, m):
    return ((n + m - 1) // m) * m


def policy_kernel(x_ref, w1_ref, b1_ref, w2_ref, b2_ref, w3_ref, b3_ref, o_ref):
    """One batch tile, batch along lanes: x (S, TB) -> actions (1, TB)."""
    x = x_ref[...]                                                # (S, TB) bf16

    # Layer 1: (H1P, S) @ (S, TB) -> (H1P, TB), f32 accumulate, bias, ReLU.
    h1 = jnp.dot(w1_ref[...], x, preferred_element_type=jnp.float32) + b1_ref[...]
    h1 = jnp.maximum(h1, 0.0)

    # Layer 2: (H2P, H1P) @ (H1P, TB) -> (H2P, TB).  bf16 operands, f32 acc.
    h2 = jnp.dot(w2_ref[...], h1.astype(jnp.bfloat16),
                 preferred_element_type=jnp.float32) + b2_ref[...]
    h2 = jnp.maximum(h2, 0.0)

    # Layer 3 (Linear(300, 1)): N(out)=1 matmul replaced by VPU multiply +
    # sublane reduction in f32; result is already lane-dense over the batch.
    a = jnp.sum(h2 * w3_ref[...], axis=0, keepdims=True) + b3_ref[...]   # (1, TB)

    o_ref[...] = jnp.tanh(a)


def _resident_spec(arr):
    """Full-block spec with a constant block index -> stays resident in VMEM."""
    n = arr.ndim
    return pl.BlockSpec(arr.shape, lambda i, _n=n: (0,) * _n)


def _choose_block_b(batch):
    """Batch-tile width (lanes)."""
    if batch <= 128:
        # Latency path: one tile clamped to the batch (8-lane granularity) —
        # no 64x redundant work on padded rows for tiny DDPG action queries.
        return _round_up(max(batch, 8), 8)
    # Throughput path: lane-dense tiles up to 1024 wide (amortizes the ~0.35 us
    # per-grid-step overhead), but capped so the grid keeps >= 2 steps and the
    # "parallel" batch axis can shard across both v7x TensorCores.
    half = _round_up(pl.cdiv(batch, 2), LANE)
    return max(LANE, min(1024, half))


@functools.partial(jax.jit, static_argnames=("block_b",))
def deterministic_policy_forward(x, padded_params, *, block_b=None):
    """x: (B, S) float32. padded_params: output of prepare_params(). -> (B, 1)."""
    B, S = x.shape
    if block_b is None:
        block_b = _choose_block_b(B)
    Bp = _round_up(max(B, block_b), block_b)

    w1t, b1 = padded_params["w1t"], padded_params["b1"]
    w2t, b2 = padded_params["w2t"], padded_params["b2"]
    w3c, b3 = padded_params["w3c"], padded_params["b3"]

    # Batch-along-lanes input: (S, Bp), bf16 (native MXU operand dtype).
    xt = jnp.pad(x, ((0, Bp - B), (0, 0))).T.astype(jnp.bfloat16)

    grid = (Bp // block_b,)

    out = pl.pallas_call(
        policy_kernel,
        out_shape=jax.ShapeDtypeStruct((1, Bp), jnp.float32),
        grid=grid,
        in_specs=[
            pl.BlockSpec((S, block_b), lambda i: (0, i)),   # x: tiled over batch lanes
            _resident_spec(w1t),
            _resident_spec(b1),
            _resident_spec(w2t),
            _resident_spec(b2),
            _resident_spec(w3c),
            _resident_spec(b3),
        ],
        out_specs=pl.BlockSpec((1, block_b), lambda i: (0, i)),
        compiler_params=pltpu.CompilerParams(
            dimension_semantics=("parallel",),   # shard batch tiles across TCs
            vmem_limit_bytes=32 << 20,           # headroom for 1024-wide tiles
        ),
    )(xt, w1t, b1, w2t, b2, w3c, b3)

    # (1, Bp) lane-packed actions -> (B, 1)
    return out[0, :B].reshape(B, OUT)


def init_params(key, state_space):
    """torch.nn.Linear-style init (U[-1/sqrt(fan_in), 1/sqrt(fan_in)]), unpadded."""
    ks = jax.random.split(key, 6)

    def linear_init(kw, kb, fan_in, fan_out):
        bound = 1.0 / jnp.sqrt(jnp.float32(fan_in))
        w = jax.random.uniform(kw, (fan_in, fan_out), jnp.float32, -bound, bound)
        b = jax.random.uniform(kb, (1, fan_out), jnp.float32, -bound, bound)
        return w, b

    w1, b1 = linear_init(ks[0], ks[1], state_space, H1)
    w2, b2 = linear_init(ks[2], ks[3], H1, H2)
    w3, b3 = linear_init(ks[4], ks[5], H2, OUT)
    return {"w1": w1, "b1": b1, "w2": w2, "b2": b2, "w3": w3, "b3": b3}


def prepare_params(params):
    """Transpose to (out, in), zero-pad hidden dims to lane multiples (exact:
    padded lanes stay 0 through ReLU), and cast the matmul weights to bf16."""
    w1, b1 = params["w1"], params["b1"]
    w2, b2 = params["w2"], params["b2"]
    w3, b3 = params["w3"], params["b3"]

    w1t = jnp.pad(w1, ((0, 0), (0, H1P - H1))).T.astype(jnp.bfloat16)        # (H1P, S)
    b1c = jnp.pad(b1, ((0, 0), (0, H1P - H1))).T                             # (H1P, 1) f32
    w2t = jnp.pad(w2, ((0, H1P - H1), (0, H2P - H2))).T.astype(jnp.bfloat16)  # (H2P, H1P)
    b2c = jnp.pad(b2, ((0, 0), (0, H2P - H2))).T                             # (H2P, 1) f32
    w3c = jnp.pad(w3, ((0, H2P - H2), (0, 0)))                               # (H2P, 1) f32
    b3c = b3.reshape(1, 1)                                                   # (1, 1) f32

    return {"w1t": w1t, "b1": b1c, "w2t": w2t, "b2": b2c, "w3c": w3c, "b3": b3c}


def _reference(x, params):
    h1 = jnp.maximum(x @ params["w1"] + params["b1"], 0.0)
    h2 = jnp.maximum(h1 @ params["w2"] + params["b2"], 0.0)
    return jnp.tanh(h2 @ params["w3"] + params["b3"])


if __name__ == "__main__":
    key = jax.random.PRNGKey(0)
    k_x, k_p, k_x2 = jax.random.split(key, 3)

    state_space = 8  # small DDPG state vector
    params = init_params(k_p, state_space)
    padded = prepare_params(params)

    # Small latency-sized batch (single clamped tile).
    batch = 2
    x = jax.random.normal(k_x, (batch, state_space), jnp.float32)
    out = jax.block_until_ready(deterministic_policy_forward(x, padded))
    ref = _reference(x, params)
    assert out.shape == (batch, OUT)
    assert jnp.allclose(out, ref, atol=2e-2, rtol=2e-2)

    # Larger batch exercising the multi-tile (grid >= 2, lane-dense) path.
    batch2 = 600
    x2 = jax.random.normal(k_x2, (batch2, state_space), jnp.float32)
    out2 = jax.block_until_ready(deterministic_policy_forward(x2, padded))
    ref2 = _reference(x2, params)
    assert out2.shape == (batch2, OUT)
    assert jnp.allclose(out2, ref2, atol=2e-2, rtol=2e-2)

    print("KERNEL_OK")
</pallas_src>

<mosaic_0001>
module attributes {stable_mosaic.version = 11 : i64} {
  func.func @policy_kernel(%arg0: i32, %arg1: memref<8x8xbf16, #tpu.memory_space<vmem>>, %arg2: memref<512x8xbf16, #tpu.memory_space<vmem>>, %arg3: memref<512x1xf32, #tpu.memory_space<vmem>>, %arg4: memref<384x512xbf16, #tpu.memory_space<vmem>>, %arg5: memref<384x1xf32, #tpu.memory_space<vmem>>, %arg6: memref<384x1xf32, #tpu.memory_space<vmem>>, %arg7: memref<1x1xf32, #tpu.memory_space<vmem>>, %arg8: memref<1x8xf32, #tpu.memory_space<vmem>>) attributes {dimension_semantics = [#tpu.dimension_semantics<parallel>], iteration_bounds = array<i64: 1>, scalar_prefetch = 0 : i64, scratch_operands = 0 : i64, tpu.core_type = #tpu.core_type<tc>, window_params = [{transform_indices = @transform_0, window_bounds = array<i64: 8, 8>}, {pipeline_mode = #tpu.pipeline_mode<synchronous>, transform_indices = @transform_1, window_bounds = array<i64: 512, 8>}, {pipeline_mode = #tpu.pipeline_mode<synchronous>, transform_indices = @transform_2, window_bounds = array<i64: 512, 1>}, {pipeline_mode = #tpu.pipeline_mode<synchronous>, transform_indices = @transform_3, window_bounds = array<i64: 384, 512>}, {pipeline_mode = #tpu.pipeline_mode<synchronous>, transform_indices = @transform_4, window_bounds = array<i64: 384, 1>}, {pipeline_mode = #tpu.pipeline_mode<synchronous>, transform_indices = @transform_5, window_bounds = array<i64: 384, 1>}, {pipeline_mode = #tpu.pipeline_mode<synchronous>, transform_indices = @transform_6, window_bounds = array<i64: 1, 1>}, {transform_indices = @transform_7, window_bounds = array<i64: 1, 8>}]} {
    %c0 = arith.constant 0 : index
    %c0_0 = arith.constant 0 : index
    %0 = vector.load %arg1[%c0, %c0_0] : memref<8x8xbf16, #tpu.memory_space<vmem>>, vector<8x8xbf16>
    %c0_1 = arith.constant 0 : index
    %c0_2 = arith.constant 0 : index
    %1 = vector.load %arg2[%c0_1, %c0_2] : memref<512x8xbf16, #tpu.memory_space<vmem>>, vector<512x8xbf16>
    %cst = arith.constant dense<0.000000e+00> : vector<512x8xf32>
    %2 = tpu.matmul %1, %0, %cst {dimension_numbers = #tpu.dot_dimension_numbers<[1], [0], [0], [1], [0, 0, 1, 1], [], []>} : vector<512x8xbf16>, vector<8x8xbf16>, vector<512x8xf32> -> vector<512x8xf32>
    %c0_3 = arith.constant 0 : index
    %c0_4 = arith.constant 0 : index
    %3 = vector.load %arg3[%c0_3, %c0_4] : memref<512x1xf32, #tpu.memory_space<vmem>>, vector<512x1xf32>
    %4 = vector.broadcast %3 : vector<512x1xf32> to vector<512x8xf32>
    %5 = arith.addf %2, %4 : vector<512x8xf32>
    %cst_5 = arith.constant 0.000000e+00 : f32
    %6 = vector.broadcast %cst_5 : f32 to vector<512x8xf32>
    %7 = arith.maximumf %5, %6 : vector<512x8xf32>
    %c0_6 = arith.constant 0 : index
    %c0_7 = arith.constant 0 : index
    %8 = vector.load %arg4[%c0_6, %c0_7] : memref<384x512xbf16, #tpu.memory_space<vmem>>, vector<384x512xbf16>
    %9 = arith.truncf %7 : vector<512x8xf32> to vector<512x8xbf16>
    %cst_8 = arith.constant dense<0.000000e+00> : vector<384x8xf32>
    %10 = tpu.matmul %8, %9, %cst_8 {dimension_numbers = #tpu.dot_dimension_numbers<[1], [0], [0], [1], [0, 0, 1, 1], [], []>} : vector<384x512xbf16>, vector<512x8xbf16>, vector<384x8xf32> -> vector<384x8xf32>
    %c0_9 = arith.constant 0 : index
    %c0_10 = arith.constant 0 : index
    %11 = vector.load %arg5[%c0_9, %c0_10] : memref<384x1xf32, #tpu.memory_space<vmem>>, vector<384x1xf32>
    %12 = vector.broadcast %11 : vector<384x1xf32> to vector<384x8xf32>
    %13 = arith.addf %10, %12 : vector<384x8xf32>
    %cst_11 = arith.constant 0.000000e+00 : f32
    %14 = vector.broadcast %cst_11 : f32 to vector<384x8xf32>
    %15 = arith.maximumf %13, %14 : vector<384x8xf32>
    %c0_12 = arith.constant 0 : index
    %c0_13 = arith.constant 0 : index
    %16 = vector.load %arg6[%c0_12, %c0_13] : memref<384x1xf32, #tpu.memory_space<vmem>>, vector<384x1xf32>
    %17 = vector.broadcast %16 : vector<384x1xf32> to vector<384x8xf32>
    %18 = arith.mulf %15, %17 : vector<384x8xf32>
    %cst_14 = arith.constant dense<0.000000e+00> : vector<8xf32>
    %19 = vector.multi_reduction <add>, %18, %cst_14 [0] : vector<384x8xf32> to vector<8xf32>
    %20 = vector.shape_cast %19 : vector<8xf32> to vector<1x8xf32>
    %c0_15 = arith.constant 0 : index
    %c0_16 = arith.constant 0 : index
    %21 = vector.load %arg7[%c0_15, %c0_16] : memref<1x1xf32, #tpu.memory_space<vmem>>, vector<1x1xf32>
    %22 = vector.broadcast %21 : vector<1x1xf32> to vector<1x8xf32>
    %23 = arith.addf %20, %22 : vector<1x8xf32>
    %24 = math.tanh %23 : vector<1x8xf32>
    %c0_17 = arith.constant 0 : index
    %c0_18 = arith.constant 0 : index
    %25 = vector.load %arg8[%c0_17, %c0_18] : memref<1x8xf32, #tpu.memory_space<vmem>>, vector<1x8xf32>
    tpu.vector_store %arg8[%c0_17, %c0_18], %24 {strides = array<i32>} : memref<1x8xf32, #tpu.memory_space<vmem>>, vector<1x8xf32>,
    return
  }
  func.func @transform_0(%arg0: i32) -> (i32, i32) {
    %c0_i32 = arith.constant 0 : i32
    %c0_i32_0 = arith.constant 0 : i32
    return %c0_i32, %arg0 : i32, i32
  }
  func.func @transform_1(%arg0: i32) -> (i32, i32) {
    %c0_i32 = arith.constant 0 : i32
    %c0_i32_0 = arith.constant 0 : i32
    %c0_i32_1 = arith.constant 0 : i32
    return %c0_i32, %c0_i32_0 : i32, i32
  }
  func.func @transform_2(%arg0: i32) -> (i32, i32) {
    %c0_i32 = arith.constant 0 : i32
    %c0_i32_0 = arith.constant 0 : i32
    %c0_i32_1 = arith.constant 0 : i32
    return %c0_i32, %c0_i32_0 : i32, i32
  }
  func.func @transform_3(%arg0: i32) -> (i32, i32) {
    %c0_i32 = arith.constant 0 : i32
    %c0_i32_0 = arith.constant 0 : i32
    %c0_i32_1 = arith.constant 0 : i32
    return %c0_i32, %c0_i32_0 : i32, i32
  }
  func.func @transform_4(%arg0: i32) -> (i32, i32) {
    %c0_i32 = arith.constant 0 : i32
    %c0_i32_0 = arith.constant 0 : i32
    %c0_i32_1 = arith.constant 0 : i32
    return %c0_i32, %c0_i32_0 : i32, i32
  }
  func.func @transform_5(%arg0: i32) -> (i32, i32) {
    %c0_i32 = arith.constant 0 : i32
    %c0_i32_0 = arith.constant 0 : i32
    %c0_i32_1 = arith.constant 0 : i32
    return %c0_i32, %c0_i32_0 : i32, i32
  }
  func.func @transform_6(%arg0: i32) -> (i32, i32) {
    %c0_i32 = arith.constant 0 : i32
    %c0_i32_0 = arith.constant 0 : i32
    %c0_i32_1 = arith.constant 0 : i32
    return %c0_i32, %c0_i32_0 : i32, i32
  }
  func.func @transform_7(%arg0: i32) -> (i32, i32) {
    %c0_i32 = arith.constant 0 : i32
    %c0_i32_0 = arith.constant 0 : i32
    return %c0_i32, %arg0 : i32, i32
  }
}

</mosaic_0001>

<llo_original>
// kernel: deterministic_policy_forward.1
$region0: #{deterministic_policy_forward.1}
  #allocation0 [shape = 'u32[]', space=smem, size = 0x4, offset = 0x4, fixed_abs, tag = 'smem constant byte address 0x4 - core index']
  #allocation1 [shape = 'u32[72,128]{1,0:T(1,128)}', space=vmem, size = 0x9000, scoped, tag = 'internal scratch']
  #allocation2 [shape = 'f32[1,1]{1,0:T(1,128)S(1)}', space=vmem, size = 0x200, scoped, tag = 'scoped memory for deterministic_policy_forward.1']
  %s0 = inlined_call_operand.vmem [shape: bf16[8,8], index: 0, kind: input, shape index: {}]
  %s1 = inlined_call_operand.vmem [shape: bf16[512,8], index: 1, kind: input, shape index: {}]
  %s2 = inlined_call_operand.vmem [shape: f32[512,1], index: 2, kind: input, shape index: {}]
  %s3 = inlined_call_operand.vmem [shape: bf16[384,512], index: 3, kind: input, shape index: {}]
  %s4 = inlined_call_operand.vmem [shape: f32[384,1], index: 4, kind: input, shape index: {}]
  %s5 = inlined_call_operand.vmem [shape: f32[384,1], index: 5, kind: input, shape index: {}]
  %s6 = inlined_call_operand.<no memory space> [shape: f32[1,1], index: 6, kind: input, shape index: {}]
  %s7 = inlined_call_operand.vmem [shape: f32[1,8], index: 7, kind: output, shape index: {}]
  %s8 = sld [smem:[#allocation0]]
  $region38: #{deterministic_policy_forward.1} parent=0
    _
  %s10 = ssub.s32 1, %s8
  %s11 = scalar_select 0, %s10, %s8
  %v12 = vstv %s6
  %13 = vst [vmem:[#allocation2] sm:$0x1] %v12
  // Predicated region
  $region2: #{deterministic_policy_forward.1} parent=0 // pred_check
    _
  $region3: #{deterministic_policy_forward.1} parent=0 // pred_check_branch
    %15 = sbr.rel (0) target = $region5
  $region4: #{deterministic_policy_forward.1} parent=0 // pred_region
    _
  $region5: #{deterministic_policy_forward.1} parent=0 // pred_fallthru
    _
  // Predicated region
  $region6: #{deterministic_policy_forward.1} parent=0 // pred_check
    _
  $region7: #{deterministic_policy_forward.1} parent=0 // pred_check_branch
    %17 = sbr.rel (0) target = $region9
  $region8: #{deterministic_policy_forward.1} parent=0 // pred_region
    _
  $region9: #{deterministic_policy_forward.1} parent=0 // pred_fallthru
    _
  // Predicated region
  $region10: #{deterministic_policy_forward.1} parent=0 // pred_check
    _
  $region11: #{deterministic_policy_forward.1} parent=0 // pred_check_branch
    %19 = sbr.rel (0) target = $region13
  $region12: #{deterministic_policy_forward.1} parent=0 // pred_region
    _
  $region13: #{deterministic_policy_forward.1} parent=0 // pred_fallthru
    _
  // Predicated region
  $region14: #{deterministic_policy_forward.1} parent=0 // pred_check
    _
  $region15: #{deterministic_policy_forward.1} parent=0 // pred_check_branch
    %21 = sbr.rel (0) target = $region17
  $region16: #{deterministic_policy_forward.1} parent=0 // pred_region
    _
  $region17: #{deterministic_policy_forward.1} parent=0 // pred_fallthru
    _
  // Predicated region
  $region18: #{deterministic_policy_forward.1} parent=0 // pred_check
    _
  $region19: #{deterministic_policy_forward.1} parent=0 // pred_check_branch
    %23 = sbr.rel (0) target = $region21
  $region20: #{deterministic_policy_forward.1} parent=0 // pred_region
    _
  $region21: #{deterministic_policy_forward.1} parent=0 // pred_fallthru
    _
  // Predicated region
  $region22: #{deterministic_policy_forward.1} parent=0 // pred_check
    _
  $region23: #{deterministic_policy_forward.1} parent=0 // pred_check_branch
    %25 = sbr.rel (0) target = $region25
  $region24: #{deterministic_policy_forward.1} parent=0 // pred_region
    _
  $region25: #{deterministic_policy_forward.1} parent=0 // pred_fallthru
    _
  // Predicated region
  $region26: #{deterministic_policy_forward.1} parent=0 // pred_check
    _
  $region27: #{deterministic_policy_forward.1} parent=0 // pred_check_branch
    %27 = sbr.rel (0) target = $region29
  $region28: #{deterministic_policy_forward.1} parent=0 // pred_region
    _
  $region29: #{deterministic_policy_forward.1} parent=0 // pred_fallthru
    _
  %v29 = vld [vmem:[%s0] sm:$0xf]
  %v30 = vld [vmem:[%s1] sm:$0xf]
  %v31 = vld [vmem:[%s1 + $0x4] sm:$0xf]
  %v32 = vld [vmem:[%s1 + $0x8] sm:$0xf]
  %v33 = vld [vmem:[%s1 + $0xc] sm:$0xf]
  %v34 = vld [vmem:[%s1 + $0x10] sm:$0xf]
  %v35 = vld [vmem:[%s1 + $0x14] sm:$0xf]
  %v36 = vld [vmem:[%s1 + $0x18] sm:$0xf]
  %v37 = vld [vmem:[%s1 + $0x1c] sm:$0xf]
  %v38 = vld [vmem:[%s1 + $0x20] sm:$0xf]
  %v39 = vld [vmem:[%s1 + $0x24] sm:$0xf]
  %v40 = vld [vmem:[%s1 + $0x28] sm:$0xf]
  %v41 = vld [vmem:[%s1 + $0x2c] sm:$0xf]
  %v42 = vld [vmem:[%s1 + $0x30] sm:$0xf]
  %v43 = vld [vmem:[%s1 + $0x34] sm:$0xf]
  %v44 = vld [vmem:[%s1 + $0x38] sm:$0xf]
  %v45 = vld [vmem:[%s1 + $0x3c] sm:$0xf]
  %v46 = vld [vmem:[%s1 + $0x40] sm:$0xf]
  %v47 = vld [vmem:[%s1 + $0x44] sm:$0xf]
  %v48 = vld [vmem:[%s1 + $0x48] sm:$0xf]
  %v49 = vld [vmem:[%s1 + $0x4c] sm:$0xf]
  %v50 = vld [vmem:[%s1 + $0x50] sm:$0xf]
  %v51 = vld [vmem:[%s1 + $0x54] sm:$0xf]
  %v52 = vld [vmem:[%s1 + $0x58] sm:$0xf]
  %v53 = vld [vmem:[%s1 + $0x5c] sm:$0xf]
  %v54 = vld [vmem:[%s1 + $0x60] sm:$0xf]
  %v55 = vld [vmem:[%s1 + $0x64] sm:$0xf]
  %v56 = vld [vmem:[%s1 + $0x68] sm:$0xf]
  %v57 = vld [vmem:[%s1 + $0x6c] sm:$0xf]
  %v58 = vld [vmem:[%s1 + $0x70] sm:$0xf]
  %v59 = vld [vmem:[%s1 + $0x74] sm:$0xf]
  %v60 = vld [vmem:[%s1 + $0x78] sm:$0xf]
  %v61 = vld [vmem:[%s1 + $0x7c] sm:$0xf]
  %v62 = vld [vmem:[%s1 + $0x80] sm:$0xf]
  %v63 = vld [vmem:[%s1 + $0x84] sm:$0xf]
  %v64 = vld [vmem:[%s1 + $0x88] sm:$0xf]
  %v65 = vld [vmem:[%s1 + $0x8c] sm:$0xf]
  %v66 = vld [vmem:[%s1 + $0x90] sm:$0xf]
  %v67 = vld [vmem:[%s1 + $0x94] sm:$0xf]
  %v68 = vld [vmem:[%s1 + $0x98] sm:$0xf]
  %v69 = vld [vmem:[%s1 + $0x9c] sm:$0xf]
  %v70 = vld [vmem:[%s1 + $0xa0] sm:$0xf]
  %v71 = vld [vmem:[%s1 + $0xa4] sm:$0xf]
  %v72 = vld [vmem:[%s1 + $0xa8] sm:$0xf]
  %v73 = vld [vmem:[%s1 + $0xac] sm:$0xf]
  %v74 = vld [vmem:[%s1 + $0xb0] sm:$0xf]
  %v75 = vld [vmem:[%s1 + $0xb4] sm:$0xf]
  %v76 = vld [vmem:[%s1 + $0xb8] sm:$0xf]
  %v77 = vld [vmem:[%s1 + $0xbc] sm:$0xf]
  %v78 = vld [vmem:[%s1 + $0xc0] sm:$0xf]
  %v79 = vld [vmem:[%s1 + $0xc4] sm:$0xf]
  %v80 = vld [vmem:[%s1 + $0xc8] sm:$0xf]
  %v81 = vld [vmem:[%s1 + $0xcc] sm:$0xf]
  %v82 = vld [vmem:[%s1 + $0xd0] sm:$0xf]
  %v83 = vld [vmem:[%s1 + $0xd4] sm:$0xf]
  %v84 = vld [vmem:[%s1 + $0xd8] sm:$0xf]
  %v85 = vld [vmem:[%s1 + $0xdc] sm:$0xf]
  %v86 = vld [vmem:[%s1 + $0xe0] sm:$0xf]
  %v87 = vld [vmem:[%s1 + $0xe4] sm:$0xf]
  %v88 = vld [vmem:[%s1 + $0xe8] sm:$0xf]
  %v89 = vld [vmem:[%s1 + $0xec] sm:$0xf]
  %v90 = vld [vmem:[%s1 + $0xf0] sm:$0xf]
  %v91 = vld [vmem:[%s1 + $0xf4] sm:$0xf]
  %v92 = vld [vmem:[%s1 + $0xf8] sm:$0xf]
  %v93 = vld [vmem:[%s1 + $0xfc] sm:$0xf]
  %v94 = vld [vmem:[%s2] sm:$0xff]
  %v95 = vld [vmem:[%s2 + $0x8] sm:$0xff]
  %v96 = vld [vmem:[%s2 + $0x10] sm:$0xff]
  %v97 = vld [vmem:[%s2 + $0x18] sm:$0xff]
  %v98 = vld [vmem:[%s2 + $0x20] sm:$0xff]
  %v99 = vld [vmem:[%s2 + $0x28] sm:$0xff]
  %v100 = vld [vmem:[%s2 + $0x30] sm:$0xff]
  %v101 = vld [vmem:[%s2 + $0x38] sm:$0xff]
  %v102 = vld [vmem:[%s2 + $0x40] sm:$0xff]
  %v103 = vld [vmem:[%s2 + $0x48] sm:$0xff]
  %v104 = vld [vmem:[%s2 + $0x50] sm:$0xff]
  %v105 = vld [vmem:[%s2 + $0x58] sm:$0xff]
  %v106 = vld [vmem:[%s2 + $0x60] sm:$0xff]
  %v107 = vld [vmem:[%s2 + $0x68] sm:$0xff]
  %v108 = vld [vmem:[%s2 + $0x70] sm:$0xff]
  %v109 = vld [vmem:[%s2 + $0x78] sm:$0xff]
  %v110 = vld [vmem:[%s2 + $0x80] sm:$0xff]
  %v111 = vld [vmem:[%s2 + $0x88] sm:$0xff]
  %v112 = vld [vmem:[%s2 + $0x90] sm:$0xff]
  %v113 = vld [vmem:[%s2 + $0x98] sm:$0xff]
  %v114 = vld [vmem:[%s2 + $0xa0] sm:$0xff]
  %v115 = vld [vmem:[%s2 + $0xa8] sm:$0xff]
  %v116 = vld [vmem:[%s2 + $0xb0] sm:$0xff]
  %v117 = vld [vmem:[%s2 + $0xb8] sm:$0xff]
  %v118 = vld [vmem:[%s2 + $0xc0] sm:$0xff]
  %v119 = vld [vmem:[%s2 + $0xc8] sm:$0xff]
  %v120 = vld [vmem:[%s2 + $0xd0] sm:$0xff]
  %v121 = vld [vmem:[%s2 + $0xd8] sm:$0xff]
  %v122 = vld [vmem:[%s2 + $0xe0] sm:$0xff]
  %v123 = vld [vmem:[%s2 + $0xe8] sm:$0xff]
  %v124 = vld [vmem:[%s2 + $0xf0] sm:$0xff]
  %v125 = vld [vmem:[%s2 + $0xf8] sm:$0xff]
  %v126 = vld [vmem:[%s2 + $0x100] sm:$0xff]
  %v127 = vld [vmem:[%s2 + $0x108] sm:$0xff]
  %v128 = vld [vmem:[%s2 + $0x110] sm:$0xff]
  %v129 = vld [vmem:[%s2 + $0x118] sm:$0xff]
  %v130 = vld [vmem:[%s2 + $0x120] sm:$0xff]
  %v131 = vld [vmem:[%s2 + $0x128] sm:$0xff]
  %v132 = vld [vmem:[%s2 + $0x130] sm:$0xff]
  %v133 = vld [vmem:[%s2 + $0x138] sm:$0xff]
  %v134 = vld [vmem:[%s2 + $0x140] sm:$0xff]
  %v135 = vld [vmem:[%s2 + $0x148] sm:$0xff]
  %v136 = vld [vmem:[%s2 + $0x150] sm:$0xff]
  %v137 = vld [vmem:[%s2 + $0x158] sm:$0xff]
  %v138 = vld [vmem:[%s2 + $0x160] sm:$0xff]
  %v139 = vld [vmem:[%s2 + $0x168] sm:$0xff]
  %v140 = vld [vmem:[%s2 + $0x170] sm:$0xff]
  %v141 = vld [vmem:[%s2 + $0x178] sm:$0xff]
  %v142 = vld [vmem:[%s2 + $0x180] sm:$0xff]
  %v143 = vld [vmem:[%s2 + $0x188] sm:$0xff]
  %v144 = vld [vmem:[%s2 + $0x190] sm:$0xff]
  %v145 = vld [vmem:[%s2 + $0x198] sm:$0xff]
  %v146 = vld [vmem:[%s2 + $0x1a0] sm:$0xff]
  %v147 = vld [vmem:[%s2 + $0x1a8] sm:$0xff]
  %v148 = vld [vmem:[%s2 + $0x1b0] sm:$0xff]
  %v149 = vld [vmem:[%s2 + $0x1b8] sm:$0xff]
  %v150 = vld [vmem:[%s2 + $0x1c0] sm:$0xff]
  %v151 = vld [vmem:[%s2 + $0x1c8] sm:$0xff]
  %v152 = vld [vmem:[%s2 + $0x1d0] sm:$0xff]
  %v153 = vld [vmem:[%s2 + $0x1d8] sm:$0xff]
  %v154 = vld [vmem:[%s2 + $0x1e0] sm:$0xff]
  %v155 = vld [vmem:[%s2 + $0x1e8] sm:$0xff]
  %v156 = vld [vmem:[%s2 + $0x1f0] sm:$0xff]
  %v157 = vld [vmem:[%s2 + $0x1f8] sm:$0xff]
  %159 = vset.pattern.permute.xlu0 0
  %160 = vperm.xlu0 %159, %v94
  %v161 = vpop.permute.xlu0 %160
  %164 = vset.pattern.permute.xlu0 0
  %165 = vperm.xlu0 %164, %v95
  %v166 = vpop.permute.xlu0 %165
  %169 = vset.pattern.permute.xlu0 0
  %170 = vperm.xlu0 %169, %v96
  %v171 = vpop.permute.xlu0 %170
  %174 = vset.pattern.permute.xlu0 0
  %175 = vperm.xlu0 %174, %v97
  %v176 = vpop.permute.xlu0 %175
  %179 = vset.pattern.permute.xlu0 0
  %180 = vperm.xlu0 %179, %v98
  %v181 = vpop.permute.xlu0 %180
  %184 = vset.pattern.permute.xlu0 0
  %185 = vperm.xlu0 %184, %v99
  %v186 = vpop.permute.xlu0 %185
  %189 = vset.pattern.permute.xlu0 0
  %190 = vperm.xlu0 %189, %v100
  %v191 = vpop.permute.xlu0 %190
  %194 = vset.pattern.permute.xlu0 0
  %195 = vperm.xlu0 %194, %v101
  %v196 = vpop.permute.xlu0 %195
  %199 = vset.pattern.permute.xlu0 0
  %200 = vperm.xlu0 %199, %v102
  %v201 = vpop.permute.xlu0 %200
  %204 = vset.pattern.permute.xlu0 0
  %205 = vperm.xlu0 %204, %v103
  %v206 = vpop.permute.xlu0 %205
  %209 = vset.pattern.permute.xlu0 0
  %210 = vperm.xlu0 %209, %v104
  %v211 = vpop.permute.xlu0 %210
  %214 = vset.pattern.permute.xlu0 0
  %215 = vperm.xlu0 %214, %v105
  %v216 = vpop.permute.xlu0 %215
  %219 = vset.pattern.permute.xlu0 0
  %220 = vperm.xlu0 %219, %v106
  %v221 = vpop.permute.xlu0 %220
  %224 = vset.pattern.permute.xlu0 0
  %225 = vperm.xlu0 %224, %v107
  %v226 = vpop.permute.xlu0 %225
  %229 = vset.pattern.permute.xlu0 0
  %230 = vperm.xlu0 %229, %v108
  %v231 = vpop.permute.xlu0 %230
  %234 = vset.pattern.permute.xlu0 0
  %235 = vperm.xlu0 %234, %v109
  %v236 = vpop.permute.xlu0 %235
  %239 = vset.pattern.permute.xlu0 0
  %240 = vperm.xlu0 %239, %v110
  %v241 = vpop.permute.xlu0 %240
  %244 = vset.pattern.permute.xlu0 0
  %245 = vperm.xlu0 %244, %v111
  %v246 = vpop.permute.xlu0 %245
  %249 = vset.pattern.permute.xlu0 0
  %250 = vperm.xlu0 %249, %v112
  %v251 = vpop.permute.xlu0 %250
  %254 = vset.pattern.permute.xlu0 0
  %255 = vperm.xlu0 %254, %v113
  %v256 = vpop.permute.xlu0 %255
  %259 = vset.pattern.permute.xlu0 0
  %260 = vperm.xlu0 %259, %v114
  %v261 = vpop.permute.xlu0 %260
  %264 = vset.pattern.permute.xlu0 0
  %265 = vperm.xlu0 %264, %v115
  %v266 = vpop.permute.xlu0 %265
  %269 = vset.pattern.permute.xlu0 0
  %270 = vperm.xlu0 %269, %v116
  %v271 = vpop.permute.xlu0 %270
  %274 = vset.pattern.permute.xlu0 0
  %275 = vperm.xlu0 %274, %v117
  %v276 = vpop.permute.xlu0 %275
  %279 = vset.pattern.permute.xlu0 0
  %280 = vperm.xlu0 %279, %v118
  %v281 = vpop.permute.xlu0 %280
  %284 = vset.pattern.permute.xlu0 0
  %285 = vperm.xlu0 %284, %v119
  %v286 = vpop.permute.xlu0 %285
  %289 = vset.pattern.permute.xlu0 0
  %290 = vperm.xlu0 %289, %v120
  %v291 = vpop.permute.xlu0 %290
  %294 = vset.pattern.permute.xlu0 0
  %295 = vperm.xlu0 %294, %v121
  %v296 = vpop.permute.xlu0 %295
  %299 = vset.pattern.permute.xlu0 0
  %300 = vperm.xlu0 %299, %v122
  %v301 = vpop.permute.xlu0 %300
  %304 = vset.pattern.permute.xlu0 0
  %305 = vperm.xlu0 %304, %v123
  %v306 = vpop.permute.xlu0 %305
  %309 = vset.pattern.permute.xlu0 0
  %310 = vperm.xlu0 %309, %v124
  %v311 = vpop.permute.xlu0 %310
  %314 = vset.pattern.permute.xlu0 0
  %315 = vperm.xlu0 %314, %v125
  %v316 = vpop.permute.xlu0 %315
  %319 = vset.pattern.permute.xlu0 0
  %320 = vperm.xlu0 %319, %v126
  %v321 = vpop.permute.xlu0 %320
  %324 = vset.pattern.permute.xlu0 0
  %325 = vperm.xlu0 %324, %v127
  %v326 = vpop.permute.xlu0 %325
  %329 = vset.pattern.permute.xlu0 0
  %330 = vperm.xlu0 %329, %v128
  %v331 = vpop.permute.xlu0 %330
  %334 = vset.pattern.permute.xlu0 0
  %335 = vperm.xlu0 %334, %v129
  %v336 = vpop.permute.xlu0 %335
  %339 = vset.pattern.permute.xlu0 0
  %340 = vperm.xlu0 %339, %v130
  %v341 = vpop.permute.xlu0 %340
  %344 = vset.pattern.permute.xlu0 0
  %345 = vperm.xlu0 %344, %v131
  %v346 = vpop.permute.xlu0 %345
  %349 = vset.pattern.permute.xlu0 0
  %350 = vperm.xlu0 %349, %v132
  %v351 = vpop.permute.xlu0 %350
  %354 = vset.pattern.permute.xlu0 0
  %355 = vperm.xlu0 %354, %v133
  %v356 = vpop.permute.xlu0 %355
  %359 = vset.pattern.permute.xlu0 0
  %360 = vperm.xlu0 %359, %v134
  %v361 = vpop.permute.xlu0 %360
  %364 = vset.pattern.permute.xlu0 0
  %365 = vperm.xlu0 %364, %v135
  %v366 = vpop.permute.xlu0 %365
  %369 = vset.pattern.permute.xlu0 0
  %370 = vperm.xlu0 %369, %v136
  %v371 = vpop.permute.xlu0 %370
  %374 = vset.pattern.permute.xlu0 0
  %375 = vperm.xlu0 %374, %v137
  %v376 = vpop.permute.xlu0 %375
  %379 = vset.pattern.permute.xlu0 0
  %380 = vperm.xlu0 %379, %v138
  %v381 = vpop.permute.xlu0 %380
  %384 = vset.pattern.permute.xlu0 0
  %385 = vperm.xlu0 %384, %v139
  %v386 = vpop.permute.xlu0 %385
  %389 = vset.pattern.permute.xlu0 0
  %390 = vperm.xlu0 %389, %v140
  %v391 = vpop.permute.xlu0 %390
  %394 = vset.pattern.permute.xlu0 0
  %395 = vperm.xlu0 %394, %v141
  %v396 = vpop.permute.xlu0 %395
  %399 = vset.pattern.permute.xlu0 0
  %400 = vperm.xlu0 %399, %v142
  %v401 = vpop.permute.xlu0 %400
  %404 = vset.pattern.permute.xlu0 0
  %405 = vperm.xlu0 %404, %v143
  %v406 = vpop.permute.xlu0 %405
  %409 = vset.pattern.permute.xlu0 0
  %410 = vperm.xlu0 %409, %v144
  %v411 = vpop.permute.xlu0 %410
  %414 = vset.pattern.permute.xlu0 0
  %415 = vperm.xlu0 %414, %v145
  %v416 = vpop.permute.xlu0 %415
  %419 = vset.pattern.permute.xlu0 0
  %420 = vperm.xlu0 %419, %v146
  %v421 = vpop.permute.xlu0 %420
  %424 = vset.pattern.permute.xlu0 0
  %425 = vperm.xlu0 %424, %v147
  %v426 = vpop.permute.xlu0 %425
  %429 = vset.pattern.permute.xlu0 0
  %430 = vperm.xlu0 %429, %v148
  %v431 = vpop.permute.xlu0 %430
  %434 = vset.pattern.permute.xlu0 0
  %435 = vperm.xlu0 %434, %v149
  %v436 = vpop.permute.xlu0 %435
  %439 = vset.pattern.permute.xlu0 0
  %440 = vperm.xlu0 %439, %v150
  %v441 = vpop.permute.xlu0 %440
  %444 = vset.pattern.permute.xlu0 0
  %445 = vperm.xlu0 %444, %v151
  %v446 = vpop.permute.xlu0 %445
  %449 = vset.pattern.permute.xlu0 0
  %450 = vperm.xlu0 %449, %v152
  %v451 = vpop.permute.xlu0 %450
  %454 = vset.pattern.permute.xlu0 0
  %455 = vperm.xlu0 %454, %v153
  %v456 = vpop.permute.xlu0 %455
  %459 = vset.pattern.permute.xlu0 0
  %460 = vperm.xlu0 %459, %v154
  %v461 = vpop.permute.xlu0 %460
  %464 = vset.pattern.permute.xlu0 0
  %465 = vperm.xlu0 %464, %v155
  %v466 = vpop.permute.xlu0 %465
  %469 = vset.pattern.permute.xlu0 0
  %470 = vperm.xlu0 %469, %v156
  %v471 = vpop.permute.xlu0 %470
  %474 = vset.pattern.permute.xlu0 0
  %475 = vperm.xlu0 %474, %v157
  %v476 = vpop.permute.xlu0 %475
  %v542 = vunpack.c.l.b16 %v30
  %v543 = vunpack.c.l.b16 %v31
  %v544 = vunpack.c.l.b16 %v32
  %v545 = vunpack.c.l.b16 %v33
  %v546 = vunpack.c.l.b16 %v34
  %v547 = vunpack.c.l.b16 %v35
  %v548 = vunpack.c.l.b16 %v36
  %v549 = vunpack.c.l.b16 %v37
  %v550 = vunpack.c.l.b16 %v38
  %v551 = vunpack.c.l.b16 %v39
  %v552 = vunpack.c.l.b16 %v40
  %v553 = vunpack.c.l.b16 %v41
  %v554 = vunpack.c.l.b16 %v42
  %v555 = vunpack.c.l.b16 %v43
  %v556 = vunpack.c.l.b16 %v44
  %v557 = vunpack.c.l.b16 %v45
  %v558 = vunpack.c.l.b16 %v46
  %v559 = vunpack.c.l.b16 %v47
  %v560 = vunpack.c.l.b16 %v48
  %v561 = vunpack.c.l.b16 %v49
  %v562 = vunpack.c.l.b16 %v50
  %v563 = vunpack.c.l.b16 %v51
  %v564 = vunpack.c.l.b16 %v52
  %v565 = vunpack.c.l.b16 %v53
  %v566 = vunpack.c.l.b16 %v54
  %v567 = vunpack.c.l.b16 %v55
  %v568 = vunpack.c.l.b16 %v56
  %v569 = vunpack.c.l.b16 %v57
  %v570 = vunpack.c.l.b16 %v58
  %v571 = vunpack.c.l.b16 %v59
  %v572 = vunpack.c.l.b16 %v60
  %v573 = vunpack.c.l.b16 %v61
  %v574 = vunpack.c.l.b16 %v62
  %v575 = vunpack.c.l.b16 %v63
  %v576 = vunpack.c.l.b16 %v64
  %v577 = vunpack.c.l.b16 %v65
  %v578 = vunpack.c.l.b16 %v66
  %v579 = vunpack.c.l.b16 %v67
  %v580 = vunpack.c.l.b16 %v68
  %v581 = vunpack.c.l.b16 %v69
  %v582 = vunpack.c.l.b16 %v70
  %v583 = vunpack.c.l.b16 %v71
  %v584 = vunpack.c.l.b16 %v72
  %v585 = vunpack.c.l.b16 %v73
  %v586 = vunpack.c.l.b16 %v74
  %v587 = vunpack.c.l.b16 %v75
  %v588 = vunpack.c.l.b16 %v76
  %v589 = vunpack.c.l.b16 %v77
  %v590 = vunpack.c.l.b16 %v78
  %v591 = vunpack.c.l.b16 %v79
  %v592 = vunpack.c.l.b16 %v80
  %v593 = vunpack.c.l.b16 %v81
  %v594 = vunpack.c.l.b16 %v82
  %v595 = vunpack.c.l.b16 %v83
  %v596 = vunpack.c.l.b16 %v84
  %v597 = vunpack.c.l.b16 %v85
  %v598 = vunpack.c.l.b16 %v86
  %v599 = vunpack.c.l.b16 %v87
  %v600 = vunpack.c.l.b16 %v88
  %v601 = vunpack.c.l.b16 %v89
  %v602 = vunpack.c.l.b16 %v90
  %v603 = vunpack.c.l.b16 %v91
  %v604 = vunpack.c.l.b16 %v92
  %v605 = vunpack.c.l.b16 %v93
  %v606 = vpack.c.b16 %v543, %v542
  %v607 = vpack.c.b16 %v545, %v544
  %v608 = vpack.c.b16 %v547, %v546
  %v609 = vpack.c.b16 %v549, %v548
  %v610 = vpack.c.b16 %v551, %v550
  %v611 = vpack.c.b16 %v553, %v552
  %v612 = vpack.c.b16 %v555, %v554
  %v613 = vpack.c.b16 %v557, %v556
  %v614 = vpack.c.b16 %v559, %v558
  %v615 = vpack.c.b16 %v561, %v560
  %v616 = vpack.c.b16 %v563, %v562
  %v617 = vpack.c.b16 %v565, %v564
  %v618 = vpack.c.b16 %v567, %v566
  %v619 = vpack.c.b16 %v569, %v568
  %v620 = vpack.c.b16 %v571, %v570
  %v621 = vpack.c.b16 %v573, %v572
  %v622 = vpack.c.b16 %v575, %v574
  %v623 = vpack.c.b16 %v577, %v576
  %v624 = vpack.c.b16 %v579, %v578
  %v625 = vpack.c.b16 %v581, %v580
  %v626 = vpack.c.b16 %v583, %v582
  %v627 = vpack.c.b16 %v585, %v584
  %v628 = vpack.c.b16 %v587, %v586
  %v629 = vpack.c.b16 %v589, %v588
  %v630 = vpack.c.b16 %v591, %v590
  %v631 = vpack.c.b16 %v593, %v592
  %v632 = vpack.c.b16 %v595, %v594
  %v633 = vpack.c.b16 %v597, %v596
  %v634 = vpack.c.b16 %v599, %v598
  %v635 = vpack.c.b16 %v601, %v600
  %v636 = vpack.c.b16 %v603, %v602
  %v637 = vpack.c.b16 %v605, %v604
  %vm638 = vcmask 64512
  %v640 = vsel %vm638, %v606, 0
  %v643 = vsel %vm638, %v607, 0
  %v646 = vsel %vm638, %v608, 0
  %v649 = vsel %vm638, %v609, 0
  %v652 = vsel %vm638, %v610, 0
  %v655 = vsel %vm638, %v611, 0
  %v658 = vsel %vm638, %v612, 0
  %v661 = vsel %vm638, %v613, 0
  %v664 = vsel %vm638, %v614, 0
  %v667 = vsel %vm638, %v615, 0
  %v670 = vsel %vm638, %v616, 0
  %v673 = vsel %vm638, %v617, 0
  %v676 = vsel %vm638, %v618, 0
  %v679 = vsel %vm638, %v619, 0
  %v682 = vsel %vm638, %v620, 0
  %v685 = vsel %vm638, %v621, 0
  %v688 = vsel %vm638, %v622, 0
  %v691 = vsel %vm638, %v623, 0
  %v694 = vsel %vm638, %v624, 0
  %v697 = vsel %vm638, %v625, 0
  %v700 = vsel %vm638, %v626, 0
  %v703 = vsel %vm638, %v627, 0
  %v706 = vsel %vm638, %v628, 0
  %v709 = vsel %vm638, %v629, 0
  %v712 = vsel %vm638, %v630, 0
  %v715 = vsel %vm638, %v631, 0
  %v718 = vsel %vm638, %v632, 0
  %v721 = vsel %vm638, %v633, 0
  %v724 = vsel %vm638, %v634, 0
  %v727 = vsel %vm638, %v635, 0
  %v730 = vsel %vm638, %v636, 0
  %v733 = vsel %vm638, %v637, 0
  %vm735 = vcmask 1043456
  %v737 = vsel %vm735, %v29, 0
  %739 = vmatpush.bf16.msra.mxu0 0
  %740 = vmatpush.bf16.msra.mxu0 0
  %741 = vmatpush.bf16.msra.mxu0 0
  %742 = vmatpush.bf16.msra.mxu0 0
  %743 = vmatpush.bf16.msra.mxu0 0
  %744 = vmatpush.bf16.msra.mxu0 0
  %745 = vmatpush.bf16.msra.mxu0 0
  %746 = vmatpush.bf16.msra.mxu0 %v737
  %747 = vmatmul.bf16.gmra.mxu0 %v640
  %v748 = vpop.f32.mrf.mxu0
  %v749 = vadd.f32 %v161, %v748
  %v750 = vpop.f32.mrf.mxu0
  %v751 = vadd.f32 %v166, %v750
  %752 = vmatmul.bf16.gmra.mxu0 %v643
  %v753 = vpop.f32.mrf.mxu0
  %v754 = vadd.f32 %v171, %v753
  %v755 = vpop.f32.mrf.mxu0
  %v756 = vadd.f32 %v176, %v755
  %757 = vmatmul.bf16.gmra.mxu0 %v646
  %v758 = vpop.f32.mrf.mxu0
  %v759 = vadd.f32 %v181, %v758
  %v760 = vpop.f32.mrf.mxu0
  %v761 = vadd.f32 %v186, %v760
  %762 = vmatmul.bf16.gmra.mxu0 %v649
  %v763 = vpop.f32.mrf.mxu0
  %v764 = vadd.f32 %v191, %v763
  %v765 = vpop.f32.mrf.mxu0
  %v766 = vadd.f32 %v196, %v765
  %767 = vmatmul.bf16.gmra.mxu0 %v652
  %v768 = vpop.f32.mrf.mxu0
  %v769 = vadd.f32 %v201, %v768
  %v770 = vpop.f32.mrf.mxu0
  %v771 = vadd.f32 %v206, %v770
  %772 = vmatmul.bf16.gmra.mxu0 %v655
  %v773 = vpop.f32.mrf.mxu0
  %v774 = vadd.f32 %v211, %v773
  %v775 = vpop.f32.mrf.mxu0
  %v776 = vadd.f32 %v216, %v775
  %777 = vmatmul.bf16.gmra.mxu0 %v658
  %v778 = vpop.f32.mrf.mxu0
  %v779 = vadd.f32 %v221, %v778
  %v780 = vpop.f32.mrf.mxu0
  %v781 = vadd.f32 %v226, %v780
  %782 = vmatmul.bf16.gmra.mxu0 %v661
  %v783 = vpop.f32.mrf.mxu0
  %v784 = vadd.f32 %v231, %v783
  %v785 = vpop.f32.mrf.mxu0
  %v786 = vadd.f32 %v236, %v785
  %787 = vmatmul.bf16.gmra.mxu0 %v664
  %v788 = vpop.f32.mrf.mxu0
  %v789 = vadd.f32 %v241, %v788
  %v790 = vpop.f32.mrf.mxu0
  %v791 = vadd.f32 %v246, %v790
  %792 = vmatmul.bf16.gmra.mxu0 %v667
  %v793 = vpop.f32.mrf.mxu0
  %v794 = vadd.f32 %v251, %v793
  %v795 = vpop.f32.mrf.mxu0
  %v796 = vadd.f32 %v256, %v795
  %797 = vmatmul.bf16.gmra.mxu0 %v670
  %v798 = vpop.f32.mrf.mxu0
  %v799 = vadd.f32 %v261, %v798
  %v800 = vpop.f32.mrf.mxu0
  %v801 = vadd.f32 %v266, %v800
  %802 = vmatmul.bf16.gmra.mxu0 %v673
  %v803 = vpop.f32.mrf.mxu0
  %v804 = vadd.f32 %v271, %v803
  %v805 = vpop.f32.mrf.mxu0
  %v806 = vadd.f32 %v276, %v805
  %807 = vmatmul.bf16.gmra.mxu0 %v676
  %v808 = vpop.f32.mrf.mxu0
  %v809 = vadd.f32 %v281, %v808
  %v810 = vpop.f32.mrf.mxu0
  %v811 = vadd.f32 %v286, %v810
  %812 = vmatmul.bf16.gmra.mxu0 %v679
  %v813 = vpop.f32.mrf.mxu0
  %v814 = vadd.f32 %v291, %v813
  %v815 = vpop.f32.mrf.mxu0
  %v816 = vadd.f32 %v296, %v815
  %817 = vmatmul.bf16.gmra.mxu0 %v682
  %v818 = vpop.f32.mrf.mxu0
  %v819 = vadd.f32 %v301, %v818
  %v820 = vpop.f32.mrf.mxu0
  %v821 = vadd.f32 %v306, %v820
  %822 = vmatmul.bf16.gmra.mxu0 %v685
  %v823 = vpop.f32.mrf.mxu0
  %v824 = vadd.f32 %v311, %v823
  %v825 = vpop.f32.mrf.mxu0
  %v826 = vadd.f32 %v316, %v825
  %827 = vmatmul.bf16.gmra.mxu0 %v688
  %v828 = vpop.f32.mrf.mxu0
  %v829 = vadd.f32 %v321, %v828
  %v830 = vpop.f32.mrf.mxu0
  %v831 = vadd.f32 %v326, %v830
  %832 = vmatmul.bf16.gmra.mxu0 %v691
  %v833 = vpop.f32.mrf.mxu0
  %v834 = vadd.f32 %v331, %v833
  %v835 = vpop.f32.mrf.mxu0
  %v836 = vadd.f32 %v336, %v835
  %837 = vmatmul.bf16.gmra.mxu0 %v694
  %v838 = vpop.f32.mrf.mxu0
  %v839 = vadd.f32 %v341, %v838
  %v840 = vpop.f32.mrf.mxu0
  %v841 = vadd.f32 %v346, %v840
  %842 = vmatmul.bf16.gmra.mxu0 %v697
  %v843 = vpop.f32.mrf.mxu0
  %v844 = vadd.f32 %v351, %v843
  %v845 = vpop.f32.mrf.mxu0
  %v846 = vadd.f32 %v356, %v845
  %847 = vmatmul.bf16.gmra.mxu0 %v700
  %v848 = vpop.f32.mrf.mxu0
  %v849 = vadd.f32 %v361, %v848
  %v850 = vpop.f32.mrf.mxu0
  %v851 = vadd.f32 %v366, %v850
  %852 = vmatmul.bf16.gmra.mxu0 %v703
  %v853 = vpop.f32.mrf.mxu0
  %v854 = vadd.f32 %v371, %v853
  %v855 = vpop.f32.mrf.mxu0
  %v856 = vadd.f32 %v376, %v855
  %857 = vmatmul.bf16.gmra.mxu0 %v706
  %v858 = vpop.f32.mrf.mxu0
  %v859 = vadd.f32 %v381, %v858
  %v860 = vpop.f32.mrf.mxu0
  %v861 = vadd.f32 %v386, %v860
  %862 = vmatmul.bf16.gmra.mxu0 %v709
  %v863 = vpop.f32.mrf.mxu0
  %v864 = vadd.f32 %v391, %v863
  %v865 = vpop.f32.mrf.mxu0
  %v866 = vadd.f32 %v396, %v865
  %867 = vmatmul.bf16.gmra.mxu0 %v712
  %v868 = vpop.f32.mrf.mxu0
  %v869 = vadd.f32 %v401, %v868
  %v870 = vpop.f32.mrf.mxu0
  %v871 = vadd.f32 %v406, %v870
  %872 = vmatmul.bf16.gmra.mxu0 %v715
  %v873 = vpop.f32.mrf.mxu0
  %v874 = vadd.f32 %v411, %v873
  %v875 = vpop.f32.mrf.mxu0
  %v876 = vadd.f32 %v416, %v875
  %877 = vmatmul.bf16.gmra.mxu0 %v718
  %v878 = vpop.f32.mrf.mxu0
  %v879 = vadd.f32 %v421, %v878
  %v880 = vpop.f32.mrf.mxu0
  %v881 = vadd.f32 %v426, %v880
  %882 = vmatmul.bf16.gmra.mxu0 %v721
  %v883 = vpop.f32.mrf.mxu0
  %v884 = vadd.f32 %v431, %v883
  %v885 = vpop.f32.mrf.mxu0
  %v886 = vadd.f32 %v436, %v885
  %887 = vmatmul.bf16.gmra.mxu0 %v724
  %v888 = vpop.f32.mrf.mxu0
  %v889 = vadd.f32 %v441, %v888
  %v890 = vpop.f32.mrf.mxu0
  %v891 = vadd.f32 %v446, %v890
  %892 = vmatmul.bf16.gmra.mxu0 %v727
  %v893 = vpop.f32.mrf.mxu0
  %v894 = vadd.f32 %v451, %v893
  %v895 = vpop.f32.mrf.mxu0
  %v896 = vadd.f32 %v456, %v895
  %897 = vmatmul.bf16.gmra.mxu0 %v730
  %v898 = vpop.f32.mrf.mxu0
  %v899 = vadd.f32 %v461, %v898
  %v900 = vpop.f32.mrf.mxu0
  %v901 = vadd.f32 %v466, %v900
  %902 = vmatmul.bf16.gmra.mxu0 %v733
  %v903 = vpop.f32.mrf.mxu0
  %v904 = vadd.f32 %v471, %v903
  %v905 = vpop.f32.mrf.mxu0
  %v906 = vadd.f32 %v476, %v905
  %907 = vdwg.mxu0
  %v908 = vmax.f32 %v749, 0.0
  %v909 = vmax.f32 %v751, 0.0
  %v910 = vmax.f32 %v754, 0.0
  %v911 = vmax.f32 %v756, 0.0
  %v912 = vmax.f32 %v759, 0.0
  %v913 = vmax.f32 %v761, 0.0
  %v914 = vmax.f32 %v764, 0.0
  %v915 = vmax.f32 %v766, 0.0
  %v916 = vmax.f32 %v769, 0.0
  %v917 = vmax.f32 %v771, 0.0
  %v918 = vmax.f32 %v774, 0.0
  %v919 = vmax.f32 %v776, 0.0
  %v920 = vmax.f32 %v779, 0.0
  %v921 = vmax.f32 %v781, 0.0
  %v922 = vmax.f32 %v784, 0.0
  %v923 = vmax.f32 %v786, 0.0
  %v924 = vmax.f32 %v789, 0.0
  %v925 = vmax.f32 %v791, 0.0
  %v926 = vmax.f32 %v794, 0.0
  %v927 = vmax.f32 %v796, 0.0
  %v928 = vmax.f32 %v799, 0.0
  %v929 = vmax.f32 %v801, 0.0
  %v930 = vmax.f32 %v804, 0.0
  %v931 = vmax.f32 %v806, 0.0
  %v932 = vmax.f32 %v809, 0.0
  %v933 = vmax.f32 %v811, 0.0
  %v934 = vmax.f32 %v814, 0.0
  %v935 = vmax.f32 %v816, 0.0
  %v936 = vmax.f32 %v819, 0.0
  %v937 = vmax.f32 %v821, 0.0
  %v938 = vmax.f32 %v824, 0.0
  %v939 = vmax.f32 %v826, 0.0
  %v940 = vmax.f32 %v829, 0.0
  %v941 = vmax.f32 %v831, 0.0
  %v942 = vmax.f32 %v834, 0.0
  %v943 = vmax.f32 %v836, 0.0
  %v944 = vmax.f32 %v839, 0.0
  %v945 = vmax.f32 %v841, 0.0
  %v946 = vmax.f32 %v844, 0.0
  %v947 = vmax.f32 %v846, 0.0
  %v948 = vmax.f32 %v849, 0.0
  %v949 = vmax.f32 %v851, 0.0
  %v950 = vmax.f32 %v854, 0.0
  %v951 = vmax.f32 %v856, 0.0
  %v952 = vmax.f32 %v859, 0.0
  %v953 = vmax.f32 %v861, 0.0
  %v954 = vmax.f32 %v864, 0.0
  %v955 = vmax.f32 %v866, 0.0
  %v956 = vmax.f32 %v869, 0.0
  %v957 = vmax.f32 %v871, 0.0
  %v958 = vmax.f32 %v874, 0.0
  %v959 = vmax.f32 %v876, 0.0
  %v960 = vmax.f32 %v879, 0.0
  %v961 = vmax.f32 %v881, 0.0
  %v962 = vmax.f32 %v884, 0.0
  %v963 = vmax.f32 %v886, 0.0
  %v964 = vmax.f32 %v889, 0.0
  %v965 = vmax.f32 %v891, 0.0
  %v966 = vmax.f32 %v894, 0.0
  %v967 = vmax.f32 %v896, 0.0
  %v968 = vmax.f32 %v899, 0.0
  %v969 = vmax.f32 %v901, 0.0
  %v970 = vmax.f32 %v904, 0.0
  %v971 = vmax.f32 %v906, 0.0
  %v972 = vld [vmem:[%s3] sm:$0xff]
  %v973 = vld [vmem:[%s3 + $0x8] sm:$0xff]
  %v974 = vld [vmem:[%s3 + $0x10] sm:$0xff]
  %v975 = vld [vmem:[%s3 + $0x18] sm:$0xff]
  %v976 = vld [vmem:[%s3 + $0x20] sm:$0xff]
  %v977 = vld [vmem:[%s3 + $0x28] sm:$0xff]
  %v978 = vld [vmem:[%s3 + $0x30] sm:$0xff]
  %v979 = vld [vmem:[%s3 + $0x38] sm:$0xff]
  %v980 = vld [vmem:[%s3 + $0x40] sm:$0xff]
  %v981 = vld [vmem:[%s3 + $0x48] sm:$0xff]
  %v982 = vld [vmem:[%s3 + $0x50] sm:$0xff]
  %v983 = vld [vmem:[%s3 + $0x58] sm:$0xff]
  %v984 = vld [vmem:[%s3 + $0x60] sm:$0xff]
  %v985 = vld [vmem:[%s3 + $0x68] sm:$0xff]
  %v986 = vld [vmem:[%s3 + $0x70] sm:$0xff]
  %v987 = vld [vmem:[%s3 + $0x78] sm:$0xff]
  %v988 = vld [vmem:[%s3 + $0x80] sm:$0xff]
  %v989 = vld [vmem:[%s3 + $0x88] sm:$0xff]
  %v990 = vld [vmem:[%s3 + $0x90] sm:$0xff]
  %v991 = vld [vmem:[%s3 + $0x98] sm:$0xff]
  %v992 = vld [vmem:[%s3 + $0xa0] sm:$0xff]
  %v993 = vld [vmem:[%s3 + $0xa8] sm:$0xff]
  %v994 = vld [vmem:[%s3 + $0xb0] sm:$0xff]
  %v995 = vld [vmem:[%s3 + $0xb8] sm:$0xff]
  %v996 = vld [vmem:[%s3 + $0xc0] sm:$0xff]
  %v997 = vld [vmem:[%s3 + $0xc8] sm:$0xff]
  %v998 = vld [vmem:[%s3 + $0xd0] sm:$0xff]
  %v999 = vld [vmem:[%s3 + $0xd8] sm:$0xff]
  %v1000 = vld [vmem:[%s3 + $0xe0] sm:$0xff]
  %v1001 = vld [vmem:[%s3 + $0xe8] sm:$0xff]
  %v1002 = vld [vmem:[%s3 + $0xf0] sm:$0xff]
  %v1003 = vld [vmem:[%s3 + $0xf8] sm:$0xff]
  %v1004 = vld [vmem:[%s3 + $0x100] sm:$0xff]
  %v1005 = vld [vmem:[%s3 + $0x108] sm:$0xff]
  %v1006 = vld [vmem:[%s3 + $0x110] sm:$0xff]
  %v1007 = vld [vmem:[%s3 + $0x118] sm:$0xff]
  %v1008 = vld [vmem:[%s3 + $0x120] sm:$0xff]
  %v1009 = vld [vmem:[%s3 + $0x128] sm:$0xff]
  %v1010 = vld [vmem:[%s3 + $0x130] sm:$0xff]
  %v1011 = vld [vmem:[%s3 + $0x138] sm:$0xff]
  %v1012 = vld [vmem:[%s3 + $0x140] sm:$0xff]
  %v1013 = vld [vmem:[%s3 + $0x148] sm:$0xff]
  %v1014 = vld [vmem:[%s3 + $0x150] sm:$0xff]
  %v1015 = vld [vmem:[%s3 + $0x158] sm:$0xff]
  %v1016 = vld [vmem:[%s3 + $0x160] sm:$0xff]
  %v1017 = vld [vmem:[%s3 + $0x168] sm:$0xff]
  %v1018 = vld [vmem:[%s3 + $0x170] sm:$0xff]
  %v1019 = vld [vmem:[%s3 + $0x178] sm:$0xff]
  %v1020 = vld [vmem:[%s3 + $0x180] sm:$0xff]
  %v1021 = vld [vmem:[%s3 + $0x188] sm:$0xff]
  %v1022 = vld [vmem:[%s3 + $0x190] sm:$0xff]
  %v1023 = vld [vmem:[%s3 + $0x198] sm:$0xff]
  %v1024 = vld [vmem:[%s3 + $0x1a0] sm:$0xff]
  %v1025 = vld [vmem:[%s3 + $0x1a8] sm:$0xff]
  %v1026 = vld [vmem:[%s3 + $0x1b0] sm:$0xff]
  %v1027 = vld [vmem:[%s3 + $0x1b8] sm:$0xff]
  %v1028 = vld [vmem:[%s3 + $0x1c0] sm:$0xff]
  %v1029 = vld [vmem:[%s3 + $0x1c8] sm:$0xff]
  %v1030 = vld [vmem:[%s3 + $0x1d0] sm:$0xff]
  %v1031 = vld [vmem:[%s3 + $0x1d8] sm:$0xff]
  %v1032 = vld [vmem:[%s3 + $0x1e0] sm:$0xff]
  %v1033 = vld [vmem:[%s3 + $0x1e8] sm:$0xff]
  %v1034 = vld [vmem:[%s3 + $0x1f0] sm:$0xff]
  %v1035 = vld [vmem:[%s3 + $0x1f8] sm:$0xff]
  %v1036 = vld [vmem:[%s3 + $0x200] sm:$0xff]
  %v1037 = vld [vmem:[%s3 + $0x208] sm:$0xff]
  %v1038 = vld [vmem:[%s3 + $0x210] sm:$0xff]
  %v1039 = vld [vmem:[%s3 + $0x218] sm:$0xff]
  %v1040 = vld [vmem:[%s3 + $0x220] sm:$0xff]
  %v1041 = vld [vmem:[%s3 + $0x228] sm:$0xff]
  %v1042 = vld [vmem:[%s3 + $0x230] sm:$0xff]
  %v1043 = vld [vmem:[%s3 + $0x238] sm:$0xff]
  %v1044 = vld [vmem:[%s3 + $0x240] sm:$0xff]
  %v1045 = vld [vmem:[%s3 + $0x248] sm:$0xff]
  %v1046 = vld [vmem:[%s3 + $0x250] sm:$0xff]
  %v1047 = vld [vmem:[%s3 + $0x258] sm:$0xff]
  %v1048 = vld [vmem:[%s3 + $0x260] sm:$0xff]
  %v1049 = vld [vmem:[%s3 + $0x268] sm:$0xff]
  %v1050 = vld [vmem:[%s3 + $0x270] sm:$0xff]
  %v1051 = vld [vmem:[%s3 + $0x278] sm:$0xff]
  %v1052 = vld [vmem:[%s3 + $0x280] sm:$0xff]
  %v1053 = vld [vmem:[%s3 + $0x288] sm:$0xff]
  %v1054 = vld [vmem:[%s3 + $0x290] sm:$0xff]
  %v1055 = vld [vmem:[%s3 + $0x298] sm:$0xff]
  %v1056 = vld [vmem:[%s3 + $0x2a0] sm:$0xff]
  %v1057 = vld [vmem:[%s3 + $0x2a8] sm:$0xff]
  %v1058 = vld [vmem:[%s3 + $0x2b0] sm:$0xff]
  %v1059 = vld [vmem:[%s3 + $0x2b8] sm:$0xff]
  %v1060 = vld [vmem:[%s3 + $0x2c0] sm:$0xff]
  %v1061 = vld [vmem:[%s3 + $0x2c8] sm:$0xff]
  %v1062 = vld [vmem:[%s3 + $0x2d0] sm:$0xff]
  %v1063 = vld [vmem:[%s3 + $0x2d8] sm:$0xff]
  %v1064 = vld [vmem:[%s3 + $0x2e0] sm:$0xff]
  %v1065 = vld [vmem:[%s3 + $0x2e8] sm:$0xff]
  %v1066 = vld [vmem:[%s3 + $0x2f0] sm:$0xff]
  %v1067 = vld [vmem:[%s3 + $0x2f8] sm:$0xff]
  %v1068 = vpack.c.bf16 %v909, %v908
  %v1069 = vpack.c.bf16 %v911, %v910
  %v1070 = vpack.c.bf16 %v913, %v912
  %v1071 = vpack.c.bf16 %v915, %v914
  %v1072 = vpack.c.bf16 %v917, %v916
  %v1073 = vpack.c.bf16 %v919, %v918
  %v1074 = vpack.c.bf16 %v921, %v920
  %v1075 = vpack.c.bf16 %v923, %v922
  %v1076 = vpack.c.bf16 %v925, %v924
  %v1077 = vpack.c.bf16 %v927, %v926
  %v1078 = vpack.c.bf16 %v929, %v928
  %v1079 = vpack.c.bf16 %v931, %v930
  %v1080 = vpack.c.bf16 %v933, %v932
  %v1081 = vpack.c.bf16 %v935, %v934
  %v1082 = vpack.c.bf16 %v937, %v936
  %v1083 = vpack.c.bf16 %v939, %v938
  %v1084 = vpack.c.bf16 %v941, %v940
  %v1085 = vpack.c.bf16 %v943, %v942
  %v1086 = vpack.c.bf16 %v945, %v944
  %v1087 = vpack.c.bf16 %v947, %v946
  %v1088 = vpack.c.bf16 %v949, %v948
  %v1089 = vpack.c.bf16 %v951, %v950
  %v1090 = vpack.c.bf16 %v953, %v952
  %v1091 = vpack.c.bf16 %v955, %v954
  %v1092 = vpack.c.bf16 %v957, %v956
  %v1093 = vpack.c.bf16 %v959, %v958
  %v1094 = vpack.c.bf16 %v961, %v960
  %v1095 = vpack.c.bf16 %v963, %v962
  %v1096 = vpack.c.bf16 %v965, %v964
  %v1097 = vpack.c.bf16 %v967, %v966
  %v1098 = vpack.c.bf16 %v969, %v968
  %v1099 = vpack.c.bf16 %v971, %v970
  %v1100 = vld [vmem:[%s4] sm:$0xff]
  %v1101 = vld [vmem:[%s4 + $0x8] sm:$0xff]
  %v1102 = vld [vmem:[%s4 + $0x10] sm:$0xff]
  %v1103 = vld [vmem:[%s4 + $0x18] sm:$0xff]
  %v1104 = vld [vmem:[%s4 + $0x20] sm:$0xff]
  %v1105 = vld [vmem:[%s4 + $0x28] sm:$0xff]
  %v1106 = vld [vmem:[%s4 + $0x30] sm:$0xff]
  %v1107 = vld [vmem:[%s4 + $0x38] sm:$0xff]
  %v1108 = vld [vmem:[%s4 + $0x40] sm:$0xff]
  %v1109 = vld [vmem:[%s4 + $0x48] sm:$0xff]
  %v1110 = vld [vmem:[%s4 + $0x50] sm:$0xff]
  %v1111 = vld [vmem:[%s4 + $0x58] sm:$0xff]
  %v1112 = vld [vmem:[%s4 + $0x60] sm:$0xff]
  %v1113 = vld [vmem:[%s4 + $0x68] sm:$0xff]
  %v1114 = vld [vmem:[%s4 + $0x70] sm:$0xff]
  %v1115 = vld [vmem:[%s4 + $0x78] sm:$0xff]
  %v1116 = vld [vmem:[%s4 + $0x80] sm:$0xff]
  %v1117 = vld [vmem:[%s4 + $0x88] sm:$0xff]
  %v1118 = vld [vmem:[%s4 + $0x90] sm:$0xff]
  %v1119 = vld [vmem:[%s4 + $0x98] sm:$0xff]
  %v1120 = vld [vmem:[%s4 + $0xa0] sm:$0xff]
  %v1121 = vld [vmem:[%s4 + $0xa8] sm:$0xff]
  %v1122 = vld [vmem:[%s4 + $0xb0] sm:$0xff]
  %v1123 = vld [vmem:[%s4 + $0xb8] sm:$0xff]
  %v1124 = vld [vmem:[%s4 + $0xc0] sm:$0xff]
  %v1125 = vld [vmem:[%s4 + $0xc8] sm:$0xff]
  %v1126 = vld [vmem:[%s4 + $0xd0] sm:$0xff]
  %v1127 = vld [vmem:[%s4 + $0xd8] sm:$0xff]
  %v1128 = vld [vmem:[%s4 + $0xe0] sm:$0xff]
  %v1129 = vld [vmem:[%s4 + $0xe8] sm:$0xff]
  %v1130 = vld [vmem:[%s4 + $0xf0] sm:$0xff]
  %v1131 = vld [vmem:[%s4 + $0xf8] sm:$0xff]
  %v1132 = vld [vmem:[%s4 + $0x100] sm:$0xff]
  %v1133 = vld [vmem:[%s4 + $0x108] sm:$0xff]
  %v1134 = vld [vmem:[%s4 + $0x110] sm:$0xff]
  %v1135 = vld [vmem:[%s4 + $0x118] sm:$0xff]
  %v1136 = vld [vmem:[%s4 + $0x120] sm:$0xff]
  %v1137 = vld [vmem:[%s4 + $0x128] sm:$0xff]
  %v1138 = vld [vmem:[%s4 + $0x130] sm:$0xff]
  %v1139 = vld [vmem:[%s4 + $0x138] sm:$0xff]
  %v1140 = vld [vmem:[%s4 + $0x140] sm:$0xff]
  %v1141 = vld [vmem:[%s4 + $0x148] sm:$0xff]
  %v1142 = vld [vmem:[%s4 + $0x150] sm:$0xff]
  %v1143 = vld [vmem:[%s4 + $0x158] sm:$0xff]
  %v1144 = vld [vmem:[%s4 + $0x160] sm:$0xff]
  %v1145 = vld [vmem:[%s4 + $0x168] sm:$0xff]
  %v1146 = vld [vmem:[%s4 + $0x170] sm:$0xff]
  %v1147 = vld [vmem:[%s4 + $0x178] sm:$0xff]
  %1149 = vset.pattern.permute.xlu0 0
  %1150 = vperm.xlu0 %1149, %v1100
  %v1151 = vpop.permute.xlu0 %1150
  %1154 = vset.pattern.permute.xlu0 0
  %1155 = vperm.xlu0 %1154, %v1101
  %v1156 = vpop.permute.xlu0 %1155
  %1159 = vset.pattern.permute.xlu0 0
  %1160 = vperm.xlu0 %1159, %v1102
  %v1161 = vpop.permute.xlu0 %1160
  %1164 = vset.pattern.permute.xlu0 0
  %1165 = vperm.xlu0 %1164, %v1103
  %v1166 = vpop.permute.xlu0 %1165
  %1169 = vset.pattern.permute.xlu0 0
  %1170 = vperm.xlu0 %1169, %v1104
  %v1171 = vpop.permute.xlu0 %1170
  %1174 = vset.pattern.permute.xlu0 0
  %1175 = vperm.xlu0 %1174, %v1105
  %v1176 = vpop.permute.xlu0 %1175
  %1179 = vset.pattern.permute.xlu0 0
  %1180 = vperm.xlu0 %1179, %v1106
  %v1181 = vpop.permute.xlu0 %1180
  %1184 = vset.pattern.permute.xlu0 0
  %1185 = vperm.xlu0 %1184, %v1107
  %v1186 = vpop.permute.xlu0 %1185
  %1189 = vset.pattern.permute.xlu0 0
  %1190 = vperm.xlu0 %1189, %v1108
  %v1191 = vpop.permute.xlu0 %1190
  %1194 = vset.pattern.permute.xlu0 0
  %1195 = vperm.xlu0 %1194, %v1109
  %v1196 = vpop.permute.xlu0 %1195
  %1199 = vset.pattern.permute.xlu0 0
  %1200 = vperm.xlu0 %1199, %v1110
  %v1201 = vpop.permute.xlu0 %1200
  %1204 = vset.pattern.permute.xlu0 0
  %1205 = vperm.xlu0 %1204, %v1111
  %v1206 = vpop.permute.xlu0 %1205
  %1209 = vset.pattern.permute.xlu0 0
  %1210 = vperm.xlu0 %1209, %v1112
  %v1211 = vpop.permute.xlu0 %1210
  %1214 = vset.pattern.permute.xlu0 0
  %1215 = vperm.xlu0 %1214, %v1113
  %v1216 = vpop.permute.xlu0 %1215
  %1219 = vset.pattern.permute.xlu0 0
  %1220 = vperm.xlu0 %1219, %v1114
  %v1221 = vpop.permute.xlu0 %1220
  %1224 = vset.pattern.permute.xlu0 0
  %1225 = vperm.xlu0 %1224, %v1115
  %v1226 = vpop.permute.xlu0 %1225
  %1229 = vset.pattern.permute.xlu0 0
  %1230 = vperm.xlu0 %1229, %v1116
  %v1231 = vpop.permute.xlu0 %1230
  %1234 = vset.pattern.permute.xlu0 0
  %1235 = vperm.xlu0 %1234, %v1117
  %v1236 = vpop.permute.xlu0 %1235
  %1239 = vset.pattern.permute.xlu0 0
  %1240 = vperm.xlu0 %1239, %v1118
  %v1241 = vpop.permute.xlu0 %1240
  %1244 = vset.pattern.permute.xlu0 0
  %1245 = vperm.xlu0 %1244, %v1119
  %v1246 = vpop.permute.xlu0 %1245
  %1249 = vset.pattern.permute.xlu0 0
  %1250 = vperm.xlu0 %1249, %v1120
  %v1251 = vpop.permute.xlu0 %1250
  %1254 = vset.pattern.permute.xlu0 0
  %1255 = vperm.xlu0 %1254, %v1121
  %v1256 = vpop.permute.xlu0 %1255
  %1259 = vset.pattern.permute.xlu0 0
  %1260 = vperm.xlu0 %1259, %v1122
  %v1261 = vpop.permute.xlu0 %1260
  %1264 = vset.pattern.permute.xlu0 0
  %1265 = vperm.xlu0 %1264, %v1123
  %v1266 = vpop.permute.xlu0 %1265
  %1269 = vset.pattern.permute.xlu0 0
  %1270 = vperm.xlu0 %1269, %v1124
  %v1271 = vpop.permute.xlu0 %1270
  %1274 = vset.pattern.permute.xlu0 0
  %1275 = vperm.xlu0 %1274, %v1125
  %v1276 = vpop.permute.xlu0 %1275
  %1279 = vset.pattern.permute.xlu0 0
  %1280 = vperm.xlu0 %1279, %v1126
  %v1281 = vpop.permute.xlu0 %1280
  %1284 = vset.pattern.permute.xlu0 0
  %1285 = vperm.xlu0 %1284, %v1127
  %v1286 = vpop.permute.xlu0 %1285
  %1289 = vset.pattern.permute.xlu0 0
  %1290 = vperm.xlu0 %1289, %v1128
  %v1291 = vpop.permute.xlu0 %1290
  %1294 = vset.pattern.permute.xlu0 0
  %1295 = vperm.xlu0 %1294, %v1129
  %v1296 = vpop.permute.xlu0 %1295
  %1299 = vset.pattern.permute.xlu0 0
  %1300 = vperm.xlu0 %1299, %v1130
  %v1301 = vpop.permute.xlu0 %1300
  %1304 = vset.pattern.permute.xlu0 0
  %1305 = vperm.xlu0 %1304, %v1131
  %v1306 = vpop.permute.xlu0 %1305
  %1309 = vset.pattern.permute.xlu0 0
  %1310 = vperm.xlu0 %1309, %v1132
  %v1311 = vpop.permute.xlu0 %1310
  %1314 = vset.pattern.permute.xlu0 0
  %1315 = vperm.xlu0 %1314, %v1133
  %v1316 = vpop.permute.xlu0 %1315
  %1319 = vset.pattern.permute.xlu0 0
  %1320 = vperm.xlu0 %1319, %v1134
  %v1321 = vpop.permute.xlu0 %1320
  %1324 = vset.pattern.permute.xlu0 0
  %1325 = vperm.xlu0 %1324, %v1135
  %v1326 = vpop.permute.xlu0 %1325
  %1329 = vset.pattern.permute.xlu0 0
  %1330 = vperm.xlu0 %1329, %v1136
  %v1331 = vpop.permute.xlu0 %1330
  %1334 = vset.pattern.permute.xlu0 0
  %1335 = vperm.xlu0 %1334, %v1137
  %v1336 = vpop.permute.xlu0 %1335
  %1339 = vset.pattern.permute.xlu0 0
  %1340 = vperm.xlu0 %1339, %v1138
  %v1341 = vpop.permute.xlu0 %1340
  %1344 = vset.pattern.permute.xlu0 0
  %1345 = vperm.xlu0 %1344, %v1139
  %v1346 = vpop.permute.xlu0 %1345
  %1349 = vset.pattern.permute.xlu0 0
  %1350 = vperm.xlu0 %1349, %v1140
  %v1351 = vpop.permute.xlu0 %1350
  %1354 = vset.pattern.permute.xlu0 0
  %1355 = vperm.xlu0 %1354, %v1141
  %v1356 = vpop.permute.xlu0 %1355
  %1359 = vset.pattern.permute.xlu0 0
  %1360 = vperm.xlu0 %1359, %v1142
  %v1361 = vpop.permute.xlu0 %1360
  %1364 = vset.pattern.permute.xlu0 0
  %1365 = vperm.xlu0 %1364, %v1143
  %v1366 = vpop.permute.xlu0 %1365
  %1369 = vset.pattern.permute.xlu0 0
  %1370 = vperm.xlu0 %1369, %v1144
  %v1371 = vpop.permute.xlu0 %1370
  %1374 = vset.pattern.permute.xlu0 0
  %1375 = vperm.xlu0 %1374, %v1145
  %v1376 = vpop.permute.xlu0 %1375
  %1379 = vset.pattern.permute.xlu0 0
  %1380 = vperm.xlu0 %1379, %v1146
  %v1381 = vpop.permute.xlu0 %1380
  %1384 = vset.pattern.permute.xlu0 0
  %1385 = vperm.xlu0 %1384, %v1147
  %v1386 = vpop.permute.xlu0 %1385
  %v1484 = vunpack.c.l.b16 %v972
  %v1485 = vunpack.c.h.b16 %v972
  %v1486 = vunpack.c.l.b16 %v973
  %v1487 = vunpack.c.h.b16 %v973
  %v1488 = vunpack.c.l.b16 %v974
  %v1489 = vunpack.c.h.b16 %v974
  %v1490 = vunpack.c.l.b16 %v975
  %v1491 = vunpack.c.h.b16 %v975
  %v1492 = vunpack.c.l.b16 %v976
  %v1493 = vunpack.c.h.b16 %v976
  %v1494 = vunpack.c.l.b16 %v977
  %v1495 = vunpack.c.h.b16 %v977
  %v1496 = vunpack.c.l.b16 %v978
  %v1497 = vunpack.c.h.b16 %v978
  %v1498 = vunpack.c.l.b16 %v979
  %v1499 = vunpack.c.h.b16 %v979
  %v1500 = vunpack.c.l.b16 %v980
  %v1501 = vunpack.c.h.b16 %v980
  %v1502 = vunpack.c.l.b16 %v981
  %v1503 = vunpack.c.h.b16 %v981
  %v1504 = vunpack.c.l.b16 %v982
  %v1505 = vunpack.c.h.b16 %v982
  %v1506 = vunpack.c.l.b16 %v983
  %v1507 = vunpack.c.h.b16 %v983
  %v1508 = vunpack.c.l.b16 %v984
  %v1509 = vunpack.c.h.b16 %v984
  %v1510 = vunpack.c.l.b16 %v985
  %v1511 = vunpack.c.h.b16 %v985
  %v1512 = vunpack.c.l.b16 %v986
  %v1513 = vunpack.c.h.b16 %v986
  %v1514 = vunpack.c.l.b16 %v987
  %v1515 = vunpack.c.h.b16 %v987
  %v1516 = vunpack.c.l.b16 %v988
  %v1517 = vunpack.c.h.b16 %v988
  %v1518 = vunpack.c.l.b16 %v989
  %v1519 = vunpack.c.h.b16 %v989
  %v1520 = vunpack.c.l.b16 %v990
  %v1521 = vunpack.c.h.b16 %v990
  %v1522 = vunpack.c.l.b16 %v991
  %v1523 = vunpack.c.h.b16 %v991
  %v1524 = vunpack.c.l.b16 %v992
  %v1525 = vunpack.c.h.b16 %v992
  %v1526 = vunpack.c.l.b16 %v993
  %v1527 = vunpack.c.h.b16 %v993
  %v1528 = vunpack.c.l.b16 %v994
  %v1529 = vunpack.c.h.b16 %v994
  %v1530 = vunpack.c.l.b16 %v995
  %v1531 = vunpack.c.h.b16 %v995
  %v1532 = vunpack.c.l.b16 %v996
  %v1533 = vunpack.c.h.b16 %v996
  %v1534 = vunpack.c.l.b16 %v997
  %v1535 = vunpack.c.h.b16 %v997
  %v1536 = vunpack.c.l.b16 %v998
  %v1537 = vunpack.c.h.b16 %v998
  %v1538 = vunpack.c.l.b16 %v999
  %v1539 = vunpack.c.h.b16 %v999
  %v1540 = vunpack.c.l.b16 %v1000
  %v1541 = vunpack.c.h.b16 %v1000
  %v1542 = vunpack.c.l.b16 %v1001
  %v1543 = vunpack.c.h.b16 %v1001
  %v1544 = vunpack.c.l.b16 %v1002
  %v1545 = vunpack.c.h.b16 %v1002
  %v1546 = vunpack.c.l.b16 %v1003
  %v1547 = vunpack.c.h.b16 %v1003
  %v1548 = vunpack.c.l.b16 %v1004
  %v1549 = vunpack.c.h.b16 %v1004
  %v1550 = vunpack.c.l.b16 %v1005
  %v1551 = vunpack.c.h.b16 %v1005
  %v1552 = vunpack.c.l.b16 %v1006
  %v1553 = vunpack.c.h.b16 %v1006
  %v1554 = vunpack.c.l.b16 %v1007
  %v1555 = vunpack.c.h.b16 %v1007
  %v1556 = vunpack.c.l.b16 %v1008
  %v1557 = vunpack.c.h.b16 %v1008
  %v1558 = vunpack.c.l.b16 %v1009
  %v1559 = vunpack.c.h.b16 %v1009
  %v1560 = vunpack.c.l.b16 %v1010
  %v1561 = vunpack.c.h.b16 %v1010
  %v1562 = vunpack.c.l.b16 %v1011
  %v1563 = vunpack.c.h.b16 %v1011
  %v1564 = vunpack.c.l.b16 %v1012
  %v1565 = vunpack.c.h.b16 %v1012
  %v1566 = vunpack.c.l.b16 %v1013
  %v1567 = vunpack.c.h.b16 %v1013
  %v1568 = vunpack.c.l.b16 %v1014
  %v1569 = vunpack.c.h.b16 %v1014
  %v1570 = vunpack.c.l.b16 %v1015
  %v1571 = vunpack.c.h.b16 %v1015
  %v1572 = vunpack.c.l.b16 %v1016
  %v1573 = vunpack.c.h.b16 %v1016
  %v1574 = vunpack.c.l.b16 %v1017
  %v1575 = vunpack.c.h.b16 %v1017
  %v1576 = vunpack.c.l.b16 %v1018
  %v1577 = vunpack.c.h.b16 %v1018
  %v1578 = vunpack.c.l.b16 %v1019
  %v1579 = vunpack.c.h.b16 %v1019
  %v1580 = vunpack.c.l.b16 %v1020
  %v1581 = vunpack.c.h.b16 %v1020
  %v1582 = vunpack.c.l.b16 %v1021
  %v1583 = vunpack.c.h.b16 %v1021
  %v1584 = vunpack.c.l.b16 %v1022
  %v1585 = vunpack.c.h.b16 %v1022
  %v1586 = vunpack.c.l.b16 %v1023
  %v1587 = vunpack.c.h.b16 %v1023
  %v1588 = vunpack.c.l.b16 %v1024
  %v1589 = vunpack.c.h.b16 %v1024
  %v1590 = vunpack.c.l.b16 %v1025
  %v1591 = vunpack.c.h.b16 %v1025
  %v1592 = vunpack.c.l.b16 %v1026
  %v1593 = vunpack.c.h.b16 %v1026
  %v1594 = vunpack.c.l.b16 %v1027
  %v1595 = vunpack.c.h.b16 %v1027
  %v1596 = vunpack.c.l.b16 %v1028
  %v1597 = vunpack.c.h.b16 %v1028
  %v1598 = vunpack.c.l.b16 %v1029
  %v1599 = vunpack.c.h.b16 %v1029
  %v1600 = vunpack.c.l.b16 %v1030
  %v1601 = vunpack.c.h.b16 %v1030
  %v1602 = vunpack.c.l.b16 %v1031
  %v1603 = vunpack.c.h.b16 %v1031
  %v1604 = vunpack.c.l.b16 %v1032
  %v1605 = vunpack.c.h.b16 %v1032
  %v1606 = vunpack.c.l.b16 %v1033
  %v1607 = vunpack.c.h.b16 %v1033
  %v1608 = vunpack.c.l.b16 %v1034
  %v1609 = vunpack.c.h.b16 %v1034
  %v1610 = vunpack.c.l.b16 %v1035
  %v1611 = vunpack.c.h.b16 %v1035
  %v1612 = vunpack.c.l.b16 %v1036
  %v1613 = vunpack.c.h.b16 %v1036
  %v1614 = vunpack.c.l.b16 %v1037
  %v1615 = vunpack.c.h.b16 %v1037
  %v1616 = vunpack.c.l.b16 %v1038
  %v1617 = vunpack.c.h.b16 %v1038
  %v1618 = vunpack.c.l.b16 %v1039
  %v1619 = vunpack.c.h.b16 %v1039
  %v1620 = vunpack.c.l.b16 %v1040
  %v1621 = vunpack.c.h.b16 %v1040
  %v1622 = vunpack.c.l.b16 %v1041
  %v1623 = vunpack.c.h.b16 %v1041
  %v1624 = vunpack.c.l.b16 %v1042
  %v1625 = vunpack.c.h.b16 %v1042
  %v1626 = vunpack.c.l.b16 %v1043
  %v1627 = vunpack.c.h.b16 %v1043
  %v1628 = vunpack.c.l.b16 %v1044
  %v1629 = vunpack.c.h.b16 %v1044
  %v1630 = vunpack.c.l.b16 %v1045
  %v1631 = vunpack.c.h.b16 %v1045
  %v1632 = vunpack.c.l.b16 %v1046
  %v1633 = vunpack.c.h.b16 %v1046
  %v1634 = vunpack.c.l.b16 %v1047
  %v1635 = vunpack.c.h.b16 %v1047
  %v1636 = vunpack.c.l.b16 %v1048
  %v1637 = vunpack.c.h.b16 %v1048
  %v1638 = vunpack.c.l.b16 %v1049
  %v1639 = vunpack.c.h.b16 %v1049
  %v1640 = vunpack.c.l.b16 %v1050
  %v1641 = vunpack.c.h.b16 %v1050
  %v1642 = vunpack.c.l.b16 %v1051
  %v1643 = vunpack.c.h.b16 %v1051
  %v1644 = vunpack.c.l.b16 %v1052
  %v1645 = vunpack.c.h.b16 %v1052
  %v1646 = vunpack.c.l.b16 %v1053
  %v1647 = vunpack.c.h.b16 %v1053
  %v1648 = vunpack.c.l.b16 %v1054
  %v1649 = vunpack.c.h.b16 %v1054
  %v1650 = vunpack.c.l.b16 %v1055
  %v1651 = vunpack.c.h.b16 %v1055
  %v1652 = vunpack.c.l.b16 %v1056
  %v1653 = vunpack.c.h.b16 %v1056
  %v1654 = vunpack.c.l.b16 %v1057
  %v1655 = vunpack.c.h.b16 %v1057
  %v1656 = vunpack.c.l.b16 %v1058
  %v1657 = vunpack.c.h.b16 %v1058
  %v1658 = vunpack.c.l.b16 %v1059
  %v1659 = vunpack.c.h.b16 %v1059
  %v1660 = vunpack.c.l.b16 %v1060
  %v1661 = vunpack.c.h.b16 %v1060
  %v1662 = vunpack.c.l.b16 %v1061
  %v1663 = vunpack.c.h.b16 %v1061
  %v1664 = vunpack.c.l.b16 %v1062
  %v1665 = vunpack.c.h.b16 %v1062
  %v1666 = vunpack.c.l.b16 %v1063
  %v1667 = vunpack.c.h.b16 %v1063
  %v1668 = vunpack.c.l.b16 %v1064
  %v1669 = vunpack.c.h.b16 %v1064
  %v1670 = vunpack.c.l.b16 %v1065
  %v1671 = vunpack.c.h.b16 %v1065
  %v1672 = vunpack.c.l.b16 %v1066
  %v1673 = vunpack.c.h.b16 %v1066
  %v1674 = vunpack.c.l.b16 %v1067
  %v1675 = vunpack.c.h.b16 %v1067
  %v1676 = vpack.c.b16 %v1488, %v1484
  %v1677 = vpack.c.b16 %v1489, %v1485
  %v1678 = vpack.c.b16 %v1490, %v1486
  %v1679 = vpack.c.b16 %v1491, %v1487
  %v1680 = vpack.c.b16 %v1496, %v1492
  %v1681 = vpack.c.b16 %v1497, %v1493
  %v1682 = vpack.c.b16 %v1498, %v1494
  %v1683 = vpack.c.b16 %v1499, %v1495
  %v1684 = vpack.c.b16 %v1504, %v1500
  %v1685 = vpack.c.b16 %v1505, %v1501
  %v1686 = vpack.c.b16 %v1506, %v1502
  %v1687 = vpack.c.b16 %v1507, %v1503
  %v1688 = vpack.c.b16 %v1512, %v1508
  %v1689 = vpack.c.b16 %v1513, %v1509
  %v1690 = vpack.c.b16 %v1514, %v1510
  %v1691 = vpack.c.b16 %v1515, %v1511
  %v1692 = vpack.c.b16 %v1520, %v1516
  %v1693 = vpack.c.b16 %v1521, %v1517
  %v1694 = vpack.c.b16 %v1522, %v1518
  %v1695 = vpack.c.b16 %v1523, %v1519
  %v1696 = vpack.c.b16 %v1528, %v1524
  %v1697 = vpack.c.b16 %v1529, %v1525
  %v1698 = vpack.c.b16 %v1530, %v1526
  %v1699 = vpack.c.b16 %v1531, %v1527
  %v1700 = vpack.c.b16 %v1536, %v1532
  %v1701 = vpack.c.b16 %v1537, %v1533
  %v1702 = vpack.c.b16 %v1538, %v1534
  %v1703 = vpack.c.b16 %v1539, %v1535
  %v1704 = vpack.c.b16 %v1544, %v1540
  %v1705 = vpack.c.b16 %v1545, %v1541
  %v1706 = vpack.c.b16 %v1546, %v1542
  %v1707 = vpack.c.b16 %v1547, %v1543
  %v1708 = vpack.c.b16 %v1552, %v1548
  %v1709 = vpack.c.b16 %v1553, %v1549
  %v1710 = vpack.c.b16 %v1554, %v1550
  %v1711 = vpack.c.b16 %v1555, %v1551
  %v1712 = vpack.c.b16 %v1560, %v1556
  %v1713 = vpack.c.b16 %v1561, %v1557
  %v1714 = vpack.c.b16 %v1562, %v1558
  %v1715 = vpack.c.b16 %v1563, %v1559
  %v1716 = vpack.c.b16 %v1568, %v1564
  %v1717 = vpack.c.b16 %v1569, %v1565
  %v1718 = vpack.c.b16 %v1570, %v1566
  %v1719 = vpack.c.b16 %v1571, %v1567
  %v1720 = vpack.c.b16 %v1576, %v1572
  %v1721 = vpack.c.b16 %v1577, %v1573
  %v1722 = vpack.c.b16 %v1578, %v1574
  %v1723 = vpack.c.b16 %v1579, %v1575
  %v1724 = vpack.c.b16 %v1584, %v1580
  %v1725 = vpack.c.b16 %v1585, %v1581
  %v1726 = vpack.c.b16 %v1586, %v1582
  %v1727 = vpack.c.b16 %v1587, %v1583
  %v1728 = vpack.c.b16 %v1592, %v1588
  %v1729 = vpack.c.b16 %v1593, %v1589
  %v1730 = vpack.c.b16 %v1594, %v1590
  %v1731 = vpack.c.b16 %v1595, %v1591
  %v1732 = vpack.c.b16 %v1600, %v1596
  %v1733 = vpack.c.b16 %v1601, %v1597
  %v1734 = vpack.c.b16 %v1602, %v1598
  %v1735 = vpack.c.b16 %v1603, %v1599
  %v1736 = vpack.c.b16 %v1608, %v1604
  %v1737 = vpack.c.b16 %v1609, %v1605
  %v1738 = vpack.c.b16 %v1610, %v1606
  %v1739 = vpack.c.b16 %v1611, %v1607
  %v1740 = vpack.c.b16 %v1616, %v1612
  %v1741 = vpack.c.b16 %v1617, %v1613
  %v1742 = vpack.c.b16 %v1618, %v1614
  %v1743 = vpack.c.b16 %v1619, %v1615
  %v1744 = vpack.c.b16 %v1624, %v1620
  %v1745 = vpack.c.b16 %v1625, %v1621
  %v1746 = vpack.c.b16 %v1626, %v1622
  %v1747 = vpack.c.b16 %v1627, %v1623
  %v1748 = vpack.c.b16 %v1632, %v1628
  %v1749 = vpack.c.b16 %v1633, %v1629
  %v1750 = vpack.c.b16 %v1634, %v1630
  %v1751 = vpack.c.b16 %v1635, %v1631
  %v1752 = vpack.c.b16 %v1640, %v1636
  %v1753 = vpack.c.b16 %v1641, %v1637
  %v1754 = vpack.c.b16 %v1642, %v1638
  %v1755 = vpack.c.b16 %v1643, %v1639
  %v1756 = vpack.c.b16 %v1648, %v1644
  %v1757 = vpack.c.b16 %v1649, %v1645
  %v1758 = vpack.c.b16 %v1650, %v1646
  %v1759 = vpack.c.b16 %v1651, %v1647
  %v1760 = vpack.c.b16 %v1656, %v1652
  %v1761 = vpack.c.b16 %v1657, %v1653
  %v1762 = vpack.c.b16 %v1658, %v1654
  %v1763 = vpack.c.b16 %v1659, %v1655
  %v1764 = vpack.c.b16 %v1664, %v1660
  %v1765 = vpack.c.b16 %v1665, %v1661
  %v1766 = vpack.c.b16 %v1666, %v1662
  %v1767 = vpack.c.b16 %v1667, %v1663
  %v1768 = vpack.c.b16 %v1672, %v1668
  %v1769 = vpack.c.b16 %v1673, %v1669
  %v1770 = vpack.c.b16 %v1674, %v1670
  %v1771 = vpack.c.b16 %v1675, %v1671
  %1868 = vmatpush.bf16.msra.mxu0 %v1075
  %1869 = vmatpush.bf16.msra.mxu0 %v1074
  %1870 = vmatpush.bf16.msra.mxu0 %v1073
  %1871 = vmatpush.bf16.msra.mxu0 %v1072
  %1872 = vmatpush.bf16.msra.mxu0 %v1071
  %1873 = vmatpush.bf16.msra.mxu0 %v1070
  %1874 = vmatpush.bf16.msra.mxu0 %v1069
  %1875 = vmatpush.bf16.msra.mxu0 %v1068
  %1876 = vmatmul.bf16.gmra.mxu0 %v1676
  %v1877 = vpop.f32.mrf.mxu0
  %v1878 = vadd.f32 %v1151, %v1877
  %v1879 = vpop.f32.mrf.mxu0
  %v1880 = vadd.f32 %v1156, %v1879
  %1881 = vmatmul.bf16.gmra.mxu0 %v1680
  %v1882 = vpop.f32.mrf.mxu0
  %v1883 = vadd.f32 %v1161, %v1882
  %v1884 = vpop.f32.mrf.mxu0
  %v1885 = vadd.f32 %v1166, %v1884
  %1886 = vmatmul.bf16.gmra.mxu0 %v1684
  %v1887 = vpop.f32.mrf.mxu0
  %v1888 = vadd.f32 %v1171, %v1887
  %v1889 = vpop.f32.mrf.mxu0
  %v1890 = vadd.f32 %v1176, %v1889
  %1891 = vmatmul.bf16.gmra.mxu0 %v1688
  %v1892 = vpop.f32.mrf.mxu0
  %v1893 = vadd.f32 %v1181, %v1892
  %v1894 = vpop.f32.mrf.mxu0
  %v1895 = vadd.f32 %v1186, %v1894
  %1896 = vmatmul.bf16.gmra.mxu0 %v1692
  %v1897 = vpop.f32.mrf.mxu0
  %v1898 = vadd.f32 %v1191, %v1897
  %v1899 = vpop.f32.mrf.mxu0
  %v1900 = vadd.f32 %v1196, %v1899
  %1901 = vmatmul.bf16.gmra.mxu0 %v1696
  %v1902 = vpop.f32.mrf.mxu0
  %v1903 = vadd.f32 %v1201, %v1902
  %v1904 = vpop.f32.mrf.mxu0
  %v1905 = vadd.f32 %v1206, %v1904
  %1906 = vmatmul.bf16.gmra.mxu0 %v1700
  %v1907 = vpop.f32.mrf.mxu0
  %v1908 = vadd.f32 %v1211, %v1907
  %v1909 = vpop.f32.mrf.mxu0
  %v1910 = vadd.f32 %v1216, %v1909
  %1911 = vmatmul.bf16.gmra.mxu0 %v1704
  %v1912 = vpop.f32.mrf.mxu0
  %v1913 = vadd.f32 %v1221, %v1912
  %v1914 = vpop.f32.mrf.mxu0
  %v1915 = vadd.f32 %v1226, %v1914
  %1916 = vmatmul.bf16.gmra.mxu0 %v1708
  %v1917 = vpop.f32.mrf.mxu0
  %v1918 = vadd.f32 %v1231, %v1917
  %v1919 = vpop.f32.mrf.mxu0
  %v1920 = vadd.f32 %v1236, %v1919
  %1921 = vmatmul.bf16.gmra.mxu0 %v1712
  %v1922 = vpop.f32.mrf.mxu0
  %v1923 = vadd.f32 %v1241, %v1922
  %v1924 = vpop.f32.mrf.mxu0
  %v1925 = vadd.f32 %v1246, %v1924
  %1926 = vmatmul.bf16.gmra.mxu0 %v1716
  %v1927 = vpop.f32.mrf.mxu0
  %v1928 = vadd.f32 %v1251, %v1927
  %v1929 = vpop.f32.mrf.mxu0
  %v1930 = vadd.f32 %v1256, %v1929
  %1931 = vmatmul.bf16.gmra.mxu0 %v1720
  %v1932 = vpop.f32.mrf.mxu0
  %v1933 = vadd.f32 %v1261, %v1932
  %v1934 = vpop.f32.mrf.mxu0
  %v1935 = vadd.f32 %v1266, %v1934
  %1936 = vmatmul.bf16.gmra.mxu0 %v1724
  %v1937 = vpop.f32.mrf.mxu0
  %v1938 = vadd.f32 %v1271, %v1937
  %v1939 = vpop.f32.mrf.mxu0
  %v1940 = vadd.f32 %v1276, %v1939
  %1941 = vmatmul.bf16.gmra.mxu0 %v1728
  %v1942 = vpop.f32.mrf.mxu0
  %v1943 = vadd.f32 %v1281, %v1942
  %v1944 = vpop.f32.mrf.mxu0
  %v1945 = vadd.f32 %v1286, %v1944
  %1946 = vmatmul.bf16.gmra.mxu0 %v1732
  %v1947 = vpop.f32.mrf.mxu0
  %v1948 = vadd.f32 %v1291, %v1947
  %v1949 = vpop.f32.mrf.mxu0
  %v1950 = vadd.f32 %v1296, %v1949
  %1951 = vmatmul.bf16.gmra.mxu0 %v1736
  %v1952 = vpop.f32.mrf.mxu0
  %v1953 = vadd.f32 %v1301, %v1952
  %v1954 = vpop.f32.mrf.mxu0
  %v1955 = vadd.f32 %v1306, %v1954
  %1956 = vmatmul.bf16.gmra.mxu0 %v1740
  %v1957 = vpop.f32.mrf.mxu0
  %v1958 = vadd.f32 %v1311, %v1957
  %v1959 = vpop.f32.mrf.mxu0
  %v1960 = vadd.f32 %v1316, %v1959
  %1961 = vmatmul.bf16.gmra.mxu0 %v1744
  %v1962 = vpop.f32.mrf.mxu0
  %v1963 = vadd.f32 %v1321, %v1962
  %v1964 = vpop.f32.mrf.mxu0
  %v1965 = vadd.f32 %v1326, %v1964
  %1966 = vmatmul.bf16.gmra.mxu0 %v1748
  %v1967 = vpop.f32.mrf.mxu0
  %v1968 = vadd.f32 %v1331, %v1967
  %v1969 = vpop.f32.mrf.mxu0
  %v1970 = vadd.f32 %v1336, %v1969
  %1971 = vmatmul.bf16.gmra.mxu0 %v1752
  %v1972 = vpop.f32.mrf.mxu0
  %v1973 = vadd.f32 %v1341, %v1972
  %v1974 = vpop.f32.mrf.mxu0
  %v1975 = vadd.f32 %v1346, %v1974
  %1976 = vmatmul.bf16.gmra.mxu0 %v1756
  %v1977 = vpop.f32.mrf.mxu0
  %v1978 = vadd.f32 %v1351, %v1977
  %v1979 = vpop.f32.mrf.mxu0
  %v1980 = vadd.f32 %v1356, %v1979
  %1981 = vmatmul.bf16.gmra.mxu0 %v1760
  %v1982 = vpop.f32.mrf.mxu0
  %v1983 = vadd.f32 %v1361, %v1982
  %v1984 = vpop.f32.mrf.mxu0
  %v1985 = vadd.f32 %v1366, %v1984
  %1986 = vmatmul.bf16.gmra.mxu0 %v1764
  %v1987 = vpop.f32.mrf.mxu0
  %v1988 = vadd.f32 %v1371, %v1987
  %v1989 = vpop.f32.mrf.mxu0
  %v1990 = vadd.f32 %v1376, %v1989
  %1991 = vmatmul.bf16.gmra.mxu0 %v1768
  %v1992 = vpop.f32.mrf.mxu0
  %v1993 = vadd.f32 %v1381, %v1992
  %v1994 = vpop.f32.mrf.mxu0
  %v1995 = vadd.f32 %v1386, %v1994
  %1996 = vdwg.mxu0
  %1997 = vmatpush.bf16.msra.mxu0 %v1083
  %1998 = vmatpush.bf16.msra.mxu0 %v1082
  %1999 = vmatpush.bf16.msra.mxu0 %v1081
  %2000 = vmatpush.bf16.msra.mxu0 %v1080
  %2001 = vmatpush.bf16.msra.mxu0 %v1079
  %2002 = vmatpush.bf16.msra.mxu0 %v1078
  %2003 = vmatpush.bf16.msra.mxu0 %v1077
  %2004 = vmatpush.bf16.msra.mxu0 %v1076
  %2005 = vmatmul.bf16.gmra.mxu0 %v1677
  %v2006 = vpop.f32.mrf.mxu0
  %v2007 = vadd.f32 %v1878, %v2006
  %v2008 = vpop.f32.mrf.mxu0
  %v2009 = vadd.f32 %v1880, %v2008
  %2010 = vmatmul.bf16.gmra.mxu0 %v1681
  %v2011 = vpop.f32.mrf.mxu0
  %v2012 = vadd.f32 %v1883, %v2011
  %v2013 = vpop.f32.mrf.mxu0
  %v2014 = vadd.f32 %v1885, %v2013
  %2015 = vmatmul.bf16.gmra.mxu0 %v1685
  %v2016 = vpop.f32.mrf.mxu0
  %v2017 = vadd.f32 %v1888, %v2016
  %v2018 = vpop.f32.mrf.mxu0
  %v2019 = vadd.f32 %v1890, %v2018
  %2020 = vmatmul.bf16.gmra.mxu0 %v1689
  %v2021 = vpop.f32.mrf.mxu0
  %v2022 = vadd.f32 %v1893, %v2021
  %v2023 = vpop.f32.mrf.mxu0
  %v2024 = vadd.f32 %v1895, %v2023
  %2025 = vmatmul.bf16.gmra.mxu0 %v1693
  %v2026 = vpop.f32.mrf.mxu0
  %v2027 = vadd.f32 %v1898, %v2026
  %v2028 = vpop.f32.mrf.mxu0
  %v2029 = vadd.f32 %v1900, %v2028
  %2030 = vmatmul.bf16.gmra.mxu0 %v1697
  %v2031 = vpop.f32.mrf.mxu0
  %v2032 = vadd.f32 %v1903, %v2031
  %v2033 = vpop.f32.mrf.mxu0
  %v2034 = vadd.f32 %v1905, %v2033
  %2035 = vmatmul.bf16.gmra.mxu0 %v1701
  %v2036 = vpop.f32.mrf.mxu0
  %v2037 = vadd.f32 %v1908, %v2036
  %v2038 = vpop.f32.mrf.mxu0
  %v2039 = vadd.f32 %v1910, %v2038
  %2040 = vmatmul.bf16.gmra.mxu0 %v1705
  %v2041 = vpop.f32.mrf.mxu0
  %v2042 = vadd.f32 %v1913, %v2041
  %v2043 = vpop.f32.mrf.mxu0
  %v2044 = vadd.f32 %v1915, %v2043
  %2045 = vmatmul.bf16.gmra.mxu0 %v1709
  %v2046 = vpop.f32.mrf.mxu0
  %v2047 = vadd.f32 %v1918, %v2046
  %v2048 = vpop.f32.mrf.mxu0
  %v2049 = vadd.f32 %v1920, %v2048
  %2050 = vmatmul.bf16.gmra.mxu0 %v1713
  %v2051 = vpop.f32.mrf.mxu0
  %v2052 = vadd.f32 %v1923, %v2051
  %v2053 = vpop.f32.mrf.mxu0
  %v2054 = vadd.f32 %v1925, %v2053
  %2055 = vmatmul.bf16.gmra.mxu0 %v1717
  %v2056 = vpop.f32.mrf.mxu0
  %v2057 = vadd.f32 %v1928, %v2056
  %v2058 = vpop.f32.mrf.mxu0
  %v2059 = vadd.f32 %v1930, %v2058
  %2060 = vmatmul.bf16.gmra.mxu0 %v1721
  %v2061 = vpop.f32.mrf.mxu0
  %v2062 = vadd.f32 %v1933, %v2061
  %v2063 = vpop.f32.mrf.mxu0
  %v2064 = vadd.f32 %v1935, %v2063
  %2065 = vmatmul.bf16.gmra.mxu0 %v1725
  %v2066 = vpop.f32.mrf.mxu0
  %v2067 = vadd.f32 %v1938, %v2066
  %v2068 = vpop.f32.mrf.mxu0
  %v2069 = vadd.f32 %v1940, %v2068
  %2070 = vmatmul.bf16.gmra.mxu0 %v1729
  %v2071 = vpop.f32.mrf.mxu0
  %v2072 = vadd.f32 %v1943, %v2071
  %v2073 = vpop.f32.mrf.mxu0
  %v2074 = vadd.f32 %v1945, %v2073
  %2075 = vmatmul.bf16.gmra.mxu0 %v1733
  %v2076 = vpop.f32.mrf.mxu0
  %v2077 = vadd.f32 %v1948, %v2076
  %v2078 = vpop.f32.mrf.mxu0
  %v2079 = vadd.f32 %v1950, %v2078
  %2080 = vmatmul.bf16.gmra.mxu0 %v1737
  %v2081 = vpop.f32.mrf.mxu0
  %v2082 = vadd.f32 %v1953, %v2081
  %v2083 = vpop.f32.mrf.mxu0
  %v2084 = vadd.f32 %v1955, %v2083
  %2085 = vmatmul.bf16.gmra.mxu0 %v1741
  %v2086 = vpop.f32.mrf.mxu0
  %v2087 = vadd.f32 %v1958, %v2086
  %v2088 = vpop.f32.mrf.mxu0
  %v2089 = vadd.f32 %v1960, %v2088
  %2090 = vmatmul.bf16.gmra.mxu0 %v1745
  %v2091 = vpop.f32.mrf.mxu0
  %v2092 = vadd.f32 %v1963, %v2091
  %v2093 = vpop.f32.mrf.mxu0
  %v2094 = vadd.f32 %v1965, %v2093
  %2095 = vmatmul.bf16.gmra.mxu0 %v1749
  %v2096 = vpop.f32.mrf.mxu0
  %v2097 = vadd.f32 %v1968, %v2096
  %v2098 = vpop.f32.mrf.mxu0
  %v2099 = vadd.f32 %v1970, %v2098
  %2100 = vmatmul.bf16.gmra.mxu0 %v1753
  %v2101 = vpop.f32.mrf.mxu0
  %v2102 = vadd.f32 %v1973, %v2101
  %v2103 = vpop.f32.mrf.mxu0
  %v2104 = vadd.f32 %v1975, %v2103
  %2105 = vmatmul.bf16.gmra.mxu0 %v1757
  %v2106 = vpop.f32.mrf.mxu0
  %v2107 = vadd.f32 %v1978, %v2106
  %v2108 = vpop.f32.mrf.mxu0
  %v2109 = vadd.f32 %v1980, %v2108
  %2110 = vmatmul.bf16.gmra.mxu0 %v1761
  %v2111 = vpop.f32.mrf.mxu0
  %v2112 = vadd.f32 %v1983, %v2111
  %v2113 = vpop.f32.mrf.mxu0
  %v2114 = vadd.f32 %v1985, %v2113
  %2115 = vmatmul.bf16.gmra.mxu0 %v1765
  %v2116 = vpop.f32.mrf.mxu0
  %v2117 = vadd.f32 %v1988, %v2116
  %v2118 = vpop.f32.mrf.mxu0
  %v2119 = vadd.f32 %v1990, %v2118
  %2120 = vmatmul.bf16.gmra.mxu0 %v1769
  %v2121 = vpop.f32.mrf.mxu0
  %v2122 = vadd.f32 %v1993, %v2121
  %v2123 = vpop.f32.mrf.mxu0
  %v2124 = vadd.f32 %v1995, %v2123
  %2125 = vdwg.mxu0
  %2126 = vmatpush.bf16.msra.mxu0 %v1091
  %2127 = vmatpush.bf16.msra.mxu0 %v1090
  %2128 = vmatpush.bf16.msra.mxu0 %v1089
  %2129 = vmatpush.bf16.msra.mxu0 %v1088
  %2130 = vmatpush.bf16.msra.mxu0 %v1087
  %2131 = vmatpush.bf16.msra.mxu0 %v1086
  %2132 = vmatpush.bf16.msra.mxu0 %v1085
  %2133 = vmatpush.bf16.msra.mxu0 %v1084
  %2134 = vmatmul.bf16.gmra.mxu0 %v1678
  %v2135 = vpop.f32.mrf.mxu0
  %v2136 = vadd.f32 %v2007, %v2135
  %v2137 = vpop.f32.mrf.mxu0
  %v2138 = vadd.f32 %v2009, %v2137
  %2139 = vmatmul.bf16.gmra.mxu0 %v1682
  %v2140 = vpop.f32.mrf.mxu0
  %v2141 = vadd.f32 %v2012, %v2140
  %v2142 = vpop.f32.mrf.mxu0
  %v2143 = vadd.f32 %v2014, %v2142
  %2144 = vmatmul.bf16.gmra.mxu0 %v1686
  %v2145 = vpop.f32.mrf.mxu0
  %v2146 = vadd.f32 %v2017, %v2145
  %v2147 = vpop.f32.mrf.mxu0
  %v2148 = vadd.f32 %v2019, %v2147
  %2149 = vmatmul.bf16.gmra.mxu0 %v1690
  %v2150 = vpop.f32.mrf.mxu0
  %v2151 = vadd.f32 %v2022, %v2150
  %v2152 = vpop.f32.mrf.mxu0
  %v2153 = vadd.f32 %v2024, %v2152
  %2154 = vmatmul.bf16.gmra.mxu0 %v1694
  %v2155 = vpop.f32.mrf.mxu0
  %v2156 = vadd.f32 %v2027, %v2155
  %v2157 = vpop.f32.mrf.mxu0
  %v2158 = vadd.f32 %v2029, %v2157
  %2159 = vmatmul.bf16.gmra.mxu0 %v1698
  %v2160 = vpop.f32.mrf.mxu0
  %v2161 = vadd.f32 %v2032, %v2160
  %v2162 = vpop.f32.mrf.mxu0
  %v2163 = vadd.f32 %v2034, %v2162
  %2164 = vmatmul.bf16.gmra.mxu0 %v1702
  %v2165 = vpop.f32.mrf.mxu0
  %v2166 = vadd.f32 %v2037, %v2165
  %v2167 = vpop.f32.mrf.mxu0
  %v2168 = vadd.f32 %v2039, %v2167
  %2169 = vmatmul.bf16.gmra.mxu0 %v1706
  %v2170 = vpop.f32.mrf.mxu0
  %v2171 = vadd.f32 %v2042, %v2170
  %v2172 = vpop.f32.mrf.mxu0
  %v2173 = vadd.f32 %v2044, %v2172
  %2174 = vmatmul.bf16.gmra.mxu0 %v1710
  %v2175 = vpop.f32.mrf.mxu0
  %v2176 = vadd.f32 %v2047, %v2175
  %v2177 = vpop.f32.mrf.mxu0
  %v2178 = vadd.f32 %v2049, %v2177
  %2179 = vmatmul.bf16.gmra.mxu0 %v1714
  %v2180 = vpop.f32.mrf.mxu0
  %v2181 = vadd.f32 %v2052, %v2180
  %v2182 = vpop.f32.mrf.mxu0
  %v2183 = vadd.f32 %v2054, %v2182
  %2184 = vmatmul.bf16.gmra.mxu0 %v1718
  %v2185 = vpop.f32.mrf.mxu0
  %v2186 = vadd.f32 %v2057, %v2185
  %v2187 = vpop.f32.mrf.mxu0
  %v2188 = vadd.f32 %v2059, %v2187
  %2189 = vmatmul.bf16.gmra.mxu0 %v1722
  %v2190 = vpop.f32.mrf.mxu0
  %v2191 = vadd.f32 %v2062, %v2190
  %v2192 = vpop.f32.mrf.mxu0
  %v2193 = vadd.f32 %v2064, %v2192
  %2194 = vmatmul.bf16.gmra.mxu0 %v1726
  %v2195 = vpop.f32.mrf.mxu0
  %v2196 = vadd.f32 %v2067, %v2195
  %v2197 = vpop.f32.mrf.mxu0
  %v2198 = vadd.f32 %v2069, %v2197
  %2199 = vmatmul.bf16.gmra.mxu0 %v1730
  %v2200 = vpop.f32.mrf.mxu0
  %v2201 = vadd.f32 %v2072, %v2200
  %v2202 = vpop.f32.mrf.mxu0
  %v2203 = vadd.f32 %v2074, %v2202
  %2204 = vmatmul.bf16.gmra.mxu0 %v1734
  %v2205 = vpop.f32.mrf.mxu0
  %v2206 = vadd.f32 %v2077, %v2205
  %v2207 = vpop.f32.mrf.mxu0
  %v2208 = vadd.f32 %v2079, %v2207
  %2209 = vmatmul.bf16.gmra.mxu0 %v1738
  %v2210 = vpop.f32.mrf.mxu0
  %v2211 = vadd.f32 %v2082, %v2210
  %v2212 = vpop.f32.mrf.mxu0
  %v2213 = vadd.f32 %v2084, %v2212
  %2214 = vmatmul.bf16.gmra.mxu0 %v1742
  %v2215 = vpop.f32.mrf.mxu0
  %v2216 = vadd.f32 %v2087, %v2215
  %v2217 = vpop.f32.mrf.mxu0
  %v2218 = vadd.f32 %v2089, %v2217
  %2219 = vmatmul.bf16.gmra.mxu0 %v1746
  %v2220 = vpop.f32.mrf.mxu0
  %v2221 = vadd.f32 %v2092, %v2220
  %v2222 = vpop.f32.mrf.mxu0
  %v2223 = vadd.f32 %v2094, %v2222
  %2224 = vmatmul.bf16.gmra.mxu0 %v1750
  %v2225 = vpop.f32.mrf.mxu0
  %v2226 = vadd.f32 %v2097, %v2225
  %v2227 = vpop.f32.mrf.mxu0
  %v2228 = vadd.f32 %v2099, %v2227
  %2229 = vmatmul.bf16.gmra.mxu0 %v1754
  %v2230 = vpop.f32.mrf.mxu0
  %v2231 = vadd.f32 %v2102, %v2230
  %v2232 = vpop.f32.mrf.mxu0
  %v2233 = vadd.f32 %v2104, %v2232
  %2234 = vmatmul.bf16.gmra.mxu0 %v1758
  %v2235 = vpop.f32.mrf.mxu0
  %v2236 = vadd.f32 %v2107, %v2235
  %v2237 = vpop.f32.mrf.mxu0
  %v2238 = vadd.f32 %v2109, %v2237
  %2239 = vmatmul.bf16.gmra.mxu0 %v1762
  %v2240 = vpop.f32.mrf.mxu0
  %v2241 = vadd.f32 %v2112, %v2240
  %v2242 = vpop.f32.mrf.mxu0
  %v2243 = vadd.f32 %v2114, %v2242
  %2244 = vmatmul.bf16.gmra.mxu0 %v1766
  %v2245 = vpop.f32.mrf.mxu0
  %v2246 = vadd.f32 %v2117, %v2245
  %v2247 = vpop.f32.mrf.mxu0
  %v2248 = vadd.f32 %v2119, %v2247
  %2249 = vmatmul.bf16.gmra.mxu0 %v1770
  %v2250 = vpop.f32.mrf.mxu0
  %v2251 = vadd.f32 %v2122, %v2250
  %v2252 = vpop.f32.mrf.mxu0
  %v2253 = vadd.f32 %v2124, %v2252
  %2254 = vdwg.mxu0
  %2255 = vmatpush.bf16.msra.mxu0 %v1099
  %2256 = vmatpush.bf16.msra.mxu0 %v1098
  %2257 = vmatpush.bf16.msra.mxu0 %v1097
  %2258 = vmatpush.bf16.msra.mxu0 %v1096
  %2259 = vmatpush.bf16.msra.mxu0 %v1095
  %2260 = vmatpush.bf16.msra.mxu0 %v1094
  %2261 = vmatpush.bf16.msra.mxu0 %v1093
  %2262 = vmatpush.bf16.msra.mxu0 %v1092
  %2263 = vmatmul.bf16.gmra.mxu0 %v1679
  %v2264 = vpop.f32.mrf.mxu0
  %v2265 = vadd.f32 %v2136, %v2264
  %v2266 = vpop.f32.mrf.mxu0
  %v2267 = vadd.f32 %v2138, %v2266
  %2268 = vmatmul.bf16.gmra.mxu0 %v1683
  %v2269 = vpop.f32.mrf.mxu0
  %v2270 = vadd.f32 %v2141, %v2269
  %v2271 = vpop.f32.mrf.mxu0
  %v2272 = vadd.f32 %v2143, %v2271
  %2273 = vmatmul.bf16.gmra.mxu0 %v1687
  %v2274 = vpop.f32.mrf.mxu0
  %v2275 = vadd.f32 %v2146, %v2274
  %v2276 = vpop.f32.mrf.mxu0
  %v2277 = vadd.f32 %v2148, %v2276
  %2278 = vmatmul.bf16.gmra.mxu0 %v1691
  %v2279 = vpop.f32.mrf.mxu0
  %v2280 = vadd.f32 %v2151, %v2279
  %v2281 = vpop.f32.mrf.mxu0
  %v2282 = vadd.f32 %v2153, %v2281
  %2283 = vmatmul.bf16.gmra.mxu0 %v1695
  %v2284 = vpop.f32.mrf.mxu0
  %v2285 = vadd.f32 %v2156, %v2284
  %v2286 = vpop.f32.mrf.mxu0
  %v2287 = vadd.f32 %v2158, %v2286
  %2288 = vmatmul.bf16.gmra.mxu0 %v1699
  %v2289 = vpop.f32.mrf.mxu0
  %v2290 = vadd.f32 %v2161, %v2289
  %v2291 = vpop.f32.mrf.mxu0
  %v2292 = vadd.f32 %v2163, %v2291
  %2293 = vmatmul.bf16.gmra.mxu0 %v1703
  %v2294 = vpop.f32.mrf.mxu0
  %v2295 = vadd.f32 %v2166, %v2294
  %v2296 = vpop.f32.mrf.mxu0
  %v2297 = vadd.f32 %v2168, %v2296
  %2298 = vmatmul.bf16.gmra.mxu0 %v1707
  %v2299 = vpop.f32.mrf.mxu0
  %v2300 = vadd.f32 %v2171, %v2299
  %v2301 = vpop.f32.mrf.mxu0
  %v2302 = vadd.f32 %v2173, %v2301
  %2303 = vmatmul.bf16.gmra.mxu0 %v1711
  %v2304 = vpop.f32.mrf.mxu0
  %v2305 = vadd.f32 %v2176, %v2304
  %v2306 = vpop.f32.mrf.mxu0
  %v2307 = vadd.f32 %v2178, %v2306
  %2308 = vmatmul.bf16.gmra.mxu0 %v1715
  %v2309 = vpop.f32.mrf.mxu0
  %v2310 = vadd.f32 %v2181, %v2309
  %v2311 = vpop.f32.mrf.mxu0
  %v2312 = vadd.f32 %v2183, %v2311
  %2313 = vmatmul.bf16.gmra.mxu0 %v1719
  %v2314 = vpop.f32.mrf.mxu0
  %v2315 = vadd.f32 %v2186, %v2314
  %v2316 = vpop.f32.mrf.mxu0
  %v2317 = vadd.f32 %v2188, %v2316
  %2318 = vmatmul.bf16.gmra.mxu0 %v1723
  %v2319 = vpop.f32.mrf.mxu0
  %v2320 = vadd.f32 %v2191, %v2319
  %v2321 = vpop.f32.mrf.mxu0
  %v2322 = vadd.f32 %v2193, %v2321
  %2323 = vmatmul.bf16.gmra.mxu0 %v1727
  %v2324 = vpop.f32.mrf.mxu0
  %v2325 = vadd.f32 %v2196, %v2324
  %v2326 = vpop.f32.mrf.mxu0
  %v2327 = vadd.f32 %v2198, %v2326
  %2328 = vmatmul.bf16.gmra.mxu0 %v1731
  %v2329 = vpop.f32.mrf.mxu0
  %v2330 = vadd.f32 %v2201, %v2329
  %v2331 = vpop.f32.mrf.mxu0
  %v2332 = vadd.f32 %v2203, %v2331
  %2333 = vmatmul.bf16.gmra.mxu0 %v1735
  %v2334 = vpop.f32.mrf.mxu0
  %v2335 = vadd.f32 %v2206, %v2334
  %v2336 = vpop.f32.mrf.mxu0
  %v2337 = vadd.f32 %v2208, %v2336
  %2338 = vmatmul.bf16.gmra.mxu0 %v1739
  %v2339 = vpop.f32.mrf.mxu0
  %v2340 = vadd.f32 %v2211, %v2339
  %v2341 = vpop.f32.mrf.mxu0
  %v2342 = vadd.f32 %v2213, %v2341
  %2343 = vmatmul.bf16.gmra.mxu0 %v1743
  %v2344 = vpop.f32.mrf.mxu0
  %v2345 = vadd.f32 %v2216, %v2344
  %v2346 = vpop.f32.mrf.mxu0
  %v2347 = vadd.f32 %v2218, %v2346
  %2348 = vmatmul.bf16.gmra.mxu0 %v1747
  %v2349 = vpop.f32.mrf.mxu0
  %v2350 = vadd.f32 %v2221, %v2349
  %v2351 = vpop.f32.mrf.mxu0
  %v2352 = vadd.f32 %v2223, %v2351
  %2353 = vmatmul.bf16.gmra.mxu0 %v1751
  %v2354 = vpop.f32.mrf.mxu0
  %v2355 = vadd.f32 %v2226, %v2354
  %v2356 = vpop.f32.mrf.mxu0
  %v2357 = vadd.f32 %v2228, %v2356
  %2358 = vmatmul.bf16.gmra.mxu0 %v1755
  %v2359 = vpop.f32.mrf.mxu0
  %v2360 = vadd.f32 %v2231, %v2359
  %v2361 = vpop.f32.mrf.mxu0
  %v2362 = vadd.f32 %v2233, %v2361
  %2363 = vmatmul.bf16.gmra.mxu0 %v1759
  %v2364 = vpop.f32.mrf.mxu0
  %v2365 = vadd.f32 %v2236, %v2364
  %v2366 = vpop.f32.mrf.mxu0
  %v2367 = vadd.f32 %v2238, %v2366
  %2368 = vmatmul.bf16.gmra.mxu0 %v1763
  %v2369 = vpop.f32.mrf.mxu0
  %v2370 = vadd.f32 %v2241, %v2369
  %v2371 = vpop.f32.mrf.mxu0
  %v2372 = vadd.f32 %v2243, %v2371
  %2373 = vmatmul.bf16.gmra.mxu0 %v1767
  %v2374 = vpop.f32.mrf.mxu0
  %v2375 = vadd.f32 %v2246, %v2374
  %v2376 = vpop.f32.mrf.mxu0
  %v2377 = vadd.f32 %v2248, %v2376
  %2378 = vmatmul.bf16.gmra.mxu0 %v1771
  %v2379 = vpop.f32.mrf.mxu0
  %v2380 = vadd.f32 %v2251, %v2379
  %v2381 = vpop.f32.mrf.mxu0
  %v2382 = vadd.f32 %v2253, %v2381
  %2383 = vdwg.mxu0
  %v2384 = vmax.f32 %v2265, 0.0
  %v2385 = vmax.f32 %v2267, 0.0
  %v2386 = vmax.f32 %v2270, 0.0
  %v2387 = vmax.f32 %v2272, 0.0
  %v2388 = vmax.f32 %v2275, 0.0
  %v2389 = vmax.f32 %v2277, 0.0
  %v2390 = vmax.f32 %v2280, 0.0
  %v2391 = vmax.f32 %v2282, 0.0
  %v2392 = vmax.f32 %v2285, 0.0
  %v2393 = vmax.f32 %v2287, 0.0
  %v2394 = vmax.f32 %v2290, 0.0
  %v2395 = vmax.f32 %v2292, 0.0
  %v2396 = vmax.f32 %v2295, 0.0
  %v2397 = vmax.f32 %v2297, 0.0
  %v2398 = vmax.f32 %v2300, 0.0
  %v2399 = vmax.f32 %v2302, 0.0
  %v2400 = vmax.f32 %v2305, 0.0
  %v2401 = vmax.f32 %v2307, 0.0
  %v2402 = vmax.f32 %v2310, 0.0
  %v2403 = vmax.f32 %v2312, 0.0
  %v2404 = vmax.f32 %v2315, 0.0
  %v2405 = vmax.f32 %v2317, 0.0
  %v2406 = vmax.f32 %v2320, 0.0
  %v2407 = vmax.f32 %v2322, 0.0
  %v2408 = vmax.f32 %v2325, 0.0
  %v2409 = vmax.f32 %v2327, 0.0
  %v2410 = vmax.f32 %v2330, 0.0
  %v2411 = vmax.f32 %v2332, 0.0
  %v2412 = vmax.f32 %v2335, 0.0
  %v2413 = vmax.f32 %v2337, 0.0
  %v2414 = vmax.f32 %v2340, 0.0
  %v2415 = vmax.f32 %v2342, 0.0
  %v2416 = vmax.f32 %v2345, 0.0
  %v2417 = vmax.f32 %v2347, 0.0
  %v2418 = vmax.f32 %v2350, 0.0
  %v2419 = vmax.f32 %v2352, 0.0
  %v2420 = vmax.f32 %v2355, 0.0
  %v2421 = vmax.f32 %v2357, 0.0
  %v2422 = vmax.f32 %v2360, 0.0
  %v2423 = vmax.f32 %v2362, 0.0
  %v2424 = vmax.f32 %v2365, 0.0
  %v2425 = vmax.f32 %v2367, 0.0
  %v2426 = vmax.f32 %v2370, 0.0
  %v2427 = vmax.f32 %v2372, 0.0
  %v2428 = vmax.f32 %v2375, 0.0
  %v2429 = vmax.f32 %v2377, 0.0
  %v2430 = vmax.f32 %v2380, 0.0
  %v2431 = vmax.f32 %v2382, 0.0
  %v2432 = vld [vmem:[%s5] sm:$0xff]
  %v2433 = vld [vmem:[%s5 + $0x8] sm:$0xff]
  %v2434 = vld [vmem:[%s5 + $0x10] sm:$0xff]
  %v2435 = vld [vmem:[%s5 + $0x18] sm:$0xff]
  %v2436 = vld [vmem:[%s5 + $0x20] sm:$0xff]
  %v2437 = vld [vmem:[%s5 + $0x28] sm:$0xff]
  %v2438 = vld [vmem:[%s5 + $0x30] sm:$0xff]
  %v2439 = vld [vmem:[%s5 + $0x38] sm:$0xff]
  %v2440 = vld [vmem:[%s5 + $0x40] sm:$0xff]
  %v2441 = vld [vmem:[%s5 + $0x48] sm:$0xff]
  %v2442 = vld [vmem:[%s5 + $0x50] sm:$0xff]
  %v2443 = vld [vmem:[%s5 + $0x58] sm:$0xff]
  %v2444 = vld [vmem:[%s5 + $0x60] sm:$0xff]
  %v2445 = vld [vmem:[%s5 + $0x68] sm:$0xff]
  %v2446 = vld [vmem:[%s5 + $0x70] sm:$0xff]
  %v2447 = vld [vmem:[%s5 + $0x78] sm:$0xff]
  %v2448 = vld [vmem:[%s5 + $0x80] sm:$0xff]
  %v2449 = vld [vmem:[%s5 + $0x88] sm:$0xff]
  %v2450 = vld [vmem:[%s5 + $0x90] sm:$0xff]
  %v2451 = vld [vmem:[%s5 + $0x98] sm:$0xff]
  %v2452 = vld [vmem:[%s5 + $0xa0] sm:$0xff]
  %v2453 = vld [vmem:[%s5 + $0xa8] sm:$0xff]
  %v2454 = vld [vmem:[%s5 + $0xb0] sm:$0xff]
  %v2455 = vld [vmem:[%s5 + $0xb8] sm:$0xff]
  %v2456 = vld [vmem:[%s5 + $0xc0] sm:$0xff]
  %v2457 = vld [vmem:[%s5 + $0xc8] sm:$0xff]
  %v2458 = vld [vmem:[%s5 + $0xd0] sm:$0xff]
  %v2459 = vld [vmem:[%s5 + $0xd8] sm:$0xff]
  %v2460 = vld [vmem:[%s5 + $0xe0] sm:$0xff]
  %v2461 = vld [vmem:[%s5 + $0xe8] sm:$0xff]
  %v2462 = vld [vmem:[%s5 + $0xf0] sm:$0xff]
  %v2463 = vld [vmem:[%s5 + $0xf8] sm:$0xff]
  %v2464 = vld [vmem:[%s5 + $0x100] sm:$0xff]
  %v2465 = vld [vmem:[%s5 + $0x108] sm:$0xff]
  %v2466 = vld [vmem:[%s5 + $0x110] sm:$0xff]
  %v2467 = vld [vmem:[%s5 + $0x118] sm:$0xff]
  %v2468 = vld [vmem:[%s5 + $0x120] sm:$0xff]
  %v2469 = vld [vmem:[%s5 + $0x128] sm:$0xff]
  %v2470 = vld [vmem:[%s5 + $0x130] sm:$0xff]
  %v2471 = vld [vmem:[%s5 + $0x138] sm:$0xff]
  %v2472 = vld [vmem:[%s5 + $0x140] sm:$0xff]
  %v2473 = vld [vmem:[%s5 + $0x148] sm:$0xff]
  %v2474 = vld [vmem:[%s5 + $0x150] sm:$0xff]
  %v2475 = vld [vmem:[%s5 + $0x158] sm:$0xff]
  %v2476 = vld [vmem:[%s5 + $0x160] sm:$0xff]
  %v2477 = vld [vmem:[%s5 + $0x168] sm:$0xff]
  %v2478 = vld [vmem:[%s5 + $0x170] sm:$0xff]
  %v2479 = vld [vmem:[%s5 + $0x178] sm:$0xff]
  %2481 = vset.pattern.permute.xlu0 0
  %2482 = vperm.xlu0 %2481, %v2432
  %v2483 = vpop.permute.xlu0 %2482
  %2486 = vset.pattern.permute.xlu0 0
  %2487 = vperm.xlu0 %2486, %v2433
  %v2488 = vpop.permute.xlu0 %2487
  %2491 = vset.pattern.permute.xlu0 0
  %2492 = vperm.xlu0 %2491, %v2434
  %v2493 = vpop.permute.xlu0 %2492
  %2496 = vset.pattern.permute.xlu0 0
  %2497 = vperm.xlu0 %2496, %v2435
  %v2498 = vpop.permute.xlu0 %2497
  %2501 = vset.pattern.permute.xlu0 0
  %2502 = vperm.xlu0 %2501, %v2436
  %v2503 = vpop.permute.xlu0 %2502
  %2506 = vset.pattern.permute.xlu0 0
  %2507 = vperm.xlu0 %2506, %v2437
  %v2508 = vpop.permute.xlu0 %2507
  %2511 = vset.pattern.permute.xlu0 0
  %2512 = vperm.xlu0 %2511, %v2438
  %v2513 = vpop.permute.xlu0 %2512
  %2516 = vset.pattern.permute.xlu0 0
  %2517 = vperm.xlu0 %2516, %v2439
  %v2518 = vpop.permute.xlu0 %2517
  %2521 = vset.pattern.permute.xlu0 0
  %2522 = vperm.xlu0 %2521, %v2440
  %v2523 = vpop.permute.xlu0 %2522
  %2526 = vset.pattern.permute.xlu0 0
  %2527 = vperm.xlu0 %2526, %v2441
  %v2528 = vpop.permute.xlu0 %2527
  %2531 = vset.pattern.permute.xlu0 0
  %2532 = vperm.xlu0 %2531, %v2442
  %v2533 = vpop.permute.xlu0 %2532
  %2536 = vset.pattern.permute.xlu0 0
  %2537 = vperm.xlu0 %2536, %v2443
  %v2538 = vpop.permute.xlu0 %2537
  %2541 = vset.pattern.permute.xlu0 0
  %2542 = vperm.xlu0 %2541, %v2444
  %v2543 = vpop.permute.xlu0 %2542
  %2546 = vset.pattern.permute.xlu0 0
  %2547 = vperm.xlu0 %2546, %v2445
  %v2548 = vpop.permute.xlu0 %2547
  %2551 = vset.pattern.permute.xlu0 0
  %2552 = vperm.xlu0 %2551, %v2446
  %v2553 = vpop.permute.xlu0 %2552
  %2556 = vset.pattern.permute.xlu0 0
  %2557 = vperm.xlu0 %2556, %v2447
  %v2558 = vpop.permute.xlu0 %2557
  %2561 = vset.pattern.permute.xlu0 0
  %2562 = vperm.xlu0 %2561, %v2448
  %v2563 = vpop.permute.xlu0 %2562
  %2566 = vset.pattern.permute.xlu0 0
  %2567 = vperm.xlu0 %2566, %v2449
  %v2568 = vpop.permute.xlu0 %2567
  %2571 = vset.pattern.permute.xlu0 0
  %2572 = vperm.xlu0 %2571, %v2450
  %v2573 = vpop.permute.xlu0 %2572
  %2576 = vset.pattern.permute.xlu0 0
  %2577 = vperm.xlu0 %2576, %v2451
  %v2578 = vpop.permute.xlu0 %2577
  %2581 = vset.pattern.permute.xlu0 0
  %2582 = vperm.xlu0 %2581, %v2452
  %v2583 = vpop.permute.xlu0 %2582
  %2586 = vset.pattern.permute.xlu0 0
  %2587 = vperm.xlu0 %2586, %v2453
  %v2588 = vpop.permute.xlu0 %2587
  %2591 = vset.pattern.permute.xlu0 0
  %2592 = vperm.xlu0 %2591, %v2454
  %v2593 = vpop.permute.xlu0 %2592
  %2596 = vset.pattern.permute.xlu0 0
  %2597 = vperm.xlu0 %2596, %v2455
  %v2598 = vpop.permute.xlu0 %2597
  %2601 = vset.pattern.permute.xlu0 0
  %2602 = vperm.xlu0 %2601, %v2456
  %v2603 = vpop.permute.xlu0 %2602
  %2606 = vset.pattern.permute.xlu0 0
  %2607 = vperm.xlu0 %2606, %v2457
  %v2608 = vpop.permute.xlu0 %2607
  %2611 = vset.pattern.permute.xlu0 0
  %2612 = vperm.xlu0 %2611, %v2458
  %v2613 = vpop.permute.xlu0 %2612
  %2616 = vset.pattern.permute.xlu0 0
  %2617 = vperm.xlu0 %2616, %v2459
  %v2618 = vpop.permute.xlu0 %2617
  %2621 = vset.pattern.permute.xlu0 0
  %2622 = vperm.xlu0 %2621, %v2460
  %v2623 = vpop.permute.xlu0 %2622
  %2626 = vset.pattern.permute.xlu0 0
  %2627 = vperm.xlu0 %2626, %v2461
  %v2628 = vpop.permute.xlu0 %2627
  %2631 = vset.pattern.permute.xlu0 0
  %2632 = vperm.xlu0 %2631, %v2462
  %v2633 = vpop.permute.xlu0 %2632
  %2636 = vset.pattern.permute.xlu0 0
  %2637 = vperm.xlu0 %2636, %v2463
  %v2638 = vpop.permute.xlu0 %2637
  %2641 = vset.pattern.permute.xlu0 0
  %2642 = vperm.xlu0 %2641, %v2464
  %v2643 = vpop.permute.xlu0 %2642
  %2646 = vset.pattern.permute.xlu0 0
  %2647 = vperm.xlu0 %2646, %v2465
  %v2648 = vpop.permute.xlu0 %2647
  %2651 = vset.pattern.permute.xlu0 0
  %2652 = vperm.xlu0 %2651, %v2466
  %v2653 = vpop.permute.xlu0 %2652
  %2656 = vset.pattern.permute.xlu0 0
  %2657 = vperm.xlu0 %2656, %v2467
  %v2658 = vpop.permute.xlu0 %2657
  %2661 = vset.pattern.permute.xlu0 0
  %2662 = vperm.xlu0 %2661, %v2468
  %v2663 = vpop.permute.xlu0 %2662
  %2666 = vset.pattern.permute.xlu0 0
  %2667 = vperm.xlu0 %2666, %v2469
  %v2668 = vpop.permute.xlu0 %2667
  %2671 = vset.pattern.permute.xlu0 0
  %2672 = vperm.xlu0 %2671, %v2470
  %v2673 = vpop.permute.xlu0 %2672
  %2676 = vset.pattern.permute.xlu0 0
  %2677 = vperm.xlu0 %2676, %v2471
  %v2678 = vpop.permute.xlu0 %2677
  %2681 = vset.pattern.permute.xlu0 0
  %2682 = vperm.xlu0 %2681, %v2472
  %v2683 = vpop.permute.xlu0 %2682
  %2686 = vset.pattern.permute.xlu0 0
  %2687 = vperm.xlu0 %2686, %v2473
  %v2688 = vpop.permute.xlu0 %2687
  %2691 = vset.pattern.permute.xlu0 0
  %2692 = vperm.xlu0 %2691, %v2474
  %v2693 = vpop.permute.xlu0 %2692
  %2696 = vset.pattern.permute.xlu0 0
  %2697 = vperm.xlu0 %2696, %v2475
  %v2698 = vpop.permute.xlu0 %2697
  %2701 = vset.pattern.permute.xlu0 0
  %2702 = vperm.xlu0 %2701, %v2476
  %v2703 = vpop.permute.xlu0 %2702
  %2706 = vset.pattern.permute.xlu0 0
  %2707 = vperm.xlu0 %2706, %v2477
  %v2708 = vpop.permute.xlu0 %2707
  %2711 = vset.pattern.permute.xlu0 0
  %2712 = vperm.xlu0 %2711, %v2478
  %v2713 = vpop.permute.xlu0 %2712
  %2716 = vset.pattern.permute.xlu0 0
  %2717 = vperm.xlu0 %2716, %v2479
  %v2718 = vpop.permute.xlu0 %2717
  %v2720 = vmul.f32 %v2384, %v2483
  %v2721 = vmul.f32 %v2385, %v2488
  %v2722 = vmul.f32 %v2386, %v2493
  %v2723 = vmul.f32 %v2387, %v2498
  %v2724 = vmul.f32 %v2388, %v2503
  %v2725 = vmul.f32 %v2389, %v2508
  %v2726 = vmul.f32 %v2390, %v2513
  %v2727 = vmul.f32 %v2391, %v2518
  %v2728 = vmul.f32 %v2392, %v2523
  %v2729 = vmul.f32 %v2393, %v2528
  %v2730 = vmul.f32 %v2394, %v2533
  %v2731 = vmul.f32 %v2395, %v2538
  %v2732 = vmul.f32 %v2396, %v2543
  %v2733 = vmul.f32 %v2397, %v2548
  %v2734 = vmul.f32 %v2398, %v2553
  %v2735 = vmul.f32 %v2399, %v2558
  %v2736 = vmul.f32 %v2400, %v2563
  %v2737 = vmul.f32 %v2401, %v2568
  %v2738 = vmul.f32 %v2402, %v2573
  %v2739 = vmul.f32 %v2403, %v2578
  %v2740 = vmul.f32 %v2404, %v2583
  %v2741 = vmul.f32 %v2405, %v2588
  %v2742 = vmul.f32 %v2406, %v2593
  %v2743 = vmul.f32 %v2407, %v2598
  %v2744 = vmul.f32 %v2408, %v2603
  %v2745 = vmul.f32 %v2409, %v2608
  %v2746 = vmul.f32 %v2410, %v2613
  %v2747 = vmul.f32 %v2411, %v2618
  %v2748 = vmul.f32 %v2412, %v2623
  %v2749 = vmul.f32 %v2413, %v2628
  %v2750 = vmul.f32 %v2414, %v2633
  %v2751 = vmul.f32 %v2415, %v2638
  %v2752 = vmul.f32 %v2416, %v2643
  %v2753 = vmul.f32 %v2417, %v2648
  %v2754 = vmul.f32 %v2418, %v2653
  %v2755 = vmul.f32 %v2419, %v2658
  %v2756 = vmul.f32 %v2420, %v2663
  %v2757 = vmul.f32 %v2421, %v2668
  %v2758 = vmul.f32 %v2422, %v2673
  %v2759 = vmul.f32 %v2423, %v2678
  %v2760 = vmul.f32 %v2424, %v2683
  %v2761 = vmul.f32 %v2425, %v2688
  %v2762 = vmul.f32 %v2426, %v2693
  %v2763 = vmul.f32 %v2427, %v2698
  %v2764 = vmul.f32 %v2428, %v2703
  %v2765 = vmul.f32 %v2429, %v2708
  %v2766 = vmul.f32 %v2430, %v2713
  %v2767 = vmul.f32 %v2431, %v2718
  %v2768 = vsel %vm638, %v2720, 0.0
  %v2769 = vsel %vm638, %v2721, 0.0
  %v2770 = vadd.f32 %v2768, %v2769
  %v2771 = vsel %vm638, %v2722, 0.0
  %v2772 = vadd.f32 %v2770, %v2771
  %v2773 = vsel %vm638, %v2723, 0.0
  %v2774 = vadd.f32 %v2772, %v2773
  %v2775 = vsel %vm638, %v2724, 0.0
  %v2776 = vadd.f32 %v2774, %v2775
  %v2777 = vsel %vm638, %v2725, 0.0
  %v2778 = vadd.f32 %v2776, %v2777
  %v2779 = vsel %vm638, %v2726, 0.0
  %v2780 = vadd.f32 %v2778, %v2779
  %v2781 = vsel %vm638, %v2727, 0.0
  %v2782 = vadd.f32 %v2780, %v2781
  %v2783 = vsel %vm638, %v2728, 0.0
  %v2784 = vadd.f32 %v2782, %v2783
  %v2785 = vsel %vm638, %v2729, 0.0
  %v2786 = vadd.f32 %v2784, %v2785
  %v2787 = vsel %vm638, %v2730, 0.0
  %v2788 = vadd.f32 %v2786, %v2787
  %v2789 = vsel %vm638, %v2731, 0.0
  %v2790 = vadd.f32 %v2788, %v2789
  %v2791 = vsel %vm638, %v2732, 0.0
  %v2792 = vadd.f32 %v2790, %v2791
  %v2793 = vsel %vm638, %v2733, 0.0
  %v2794 = vadd.f32 %v2792, %v2793
  %v2795 = vsel %vm638, %v2734, 0.0
  %v2796 = vadd.f32 %v2794, %v2795
  %v2797 = vsel %vm638, %v2735, 0.0
  %v2798 = vadd.f32 %v2796, %v2797
  %v2799 = vsel %vm638, %v2736, 0.0
  %v2800 = vadd.f32 %v2798, %v2799
  %v2801 = vsel %vm638, %v2737, 0.0
  %v2802 = vadd.f32 %v2800, %v2801
  %v2803 = vsel %vm638, %v2738, 0.0
  %v2804 = vadd.f32 %v2802, %v2803
  %v2805 = vsel %vm638, %v2739, 0.0
  %v2806 = vadd.f32 %v2804, %v2805
  %v2807 = vsel %vm638, %v2740, 0.0
  %v2808 = vadd.f32 %v2806, %v2807
  %v2809 = vsel %vm638, %v2741, 0.0
  %v2810 = vadd.f32 %v2808, %v2809
  %v2811 = vsel %vm638, %v2742, 0.0
  %v2812 = vadd.f32 %v2810, %v2811
  %v2813 = vsel %vm638, %v2743, 0.0
  %v2814 = vadd.f32 %v2812, %v2813
  %v2815 = vsel %vm638, %v2744, 0.0
  %v2816 = vadd.f32 %v2814, %v2815
  %v2817 = vsel %vm638, %v2745, 0.0
  %v2818 = vadd.f32 %v2816, %v2817
  %v2819 = vsel %vm638, %v2746, 0.0
  %v2820 = vadd.f32 %v2818, %v2819
  %v2821 = vsel %vm638, %v2747, 0.0
  %v2822 = vadd.f32 %v2820, %v2821
  %v2823 = vsel %vm638, %v2748, 0.0
  %v2824 = vadd.f32 %v2822, %v2823
  %v2825 = vsel %vm638, %v2749, 0.0
  %v2826 = vadd.f32 %v2824, %v2825
  %v2827 = vsel %vm638, %v2750, 0.0
  %v2828 = vadd.f32 %v2826, %v2827
  %v2829 = vsel %vm638, %v2751, 0.0
  %v2830 = vadd.f32 %v2828, %v2829
  %v2831 = vsel %vm638, %v2752, 0.0
  %v2832 = vadd.f32 %v2830, %v2831
  %v2833 = vsel %vm638, %v2753, 0.0
  %v2834 = vadd.f32 %v2832, %v2833
  %v2835 = vsel %vm638, %v2754, 0.0
  %v2836 = vadd.f32 %v2834, %v2835
  %v2837 = vsel %vm638, %v2755, 0.0
  %v2838 = vadd.f32 %v2836, %v2837
  %v2839 = vsel %vm638, %v2756, 0.0
  %v2840 = vadd.f32 %v2838, %v2839
  %v2841 = vsel %vm638, %v2757, 0.0
  %v2842 = vadd.f32 %v2840, %v2841
  %v2843 = vsel %vm638, %v2758, 0.0
  %v2844 = vadd.f32 %v2842, %v2843
  %v2845 = vsel %vm638, %v2759, 0.0
  %v2846 = vadd.f32 %v2844, %v2845
  %v2847 = vsel %vm638, %v2760, 0.0
  %v2848 = vadd.f32 %v2846, %v2847
  %v2849 = vsel %vm638, %v2761, 0.0
  %v2850 = vadd.f32 %v2848, %v2849
  %v2851 = vsel %vm638, %v2762, 0.0
  %v2852 = vadd.f32 %v2850, %v2851
  %v2853 = vsel %vm638, %v2763, 0.0
  %v2854 = vadd.f32 %v2852, %v2853
  %v2855 = vsel %vm638, %v2764, 0.0
  %v2856 = vadd.f32 %v2854, %v2855
  %v2857 = vsel %vm638, %v2765, 0.0
  %v2858 = vadd.f32 %v2856, %v2857
  %v2859 = vsel %vm638, %v2766, 0.0
  %v2860 = vadd.f32 %v2858, %v2859
  %v2861 = vsel %vm638, %v2767, 0.0
  %v2862 = vadd.f32 %v2860, %v2861
  %v2863 = vrot.slane %v2862, 4
  %v2864 = vadd.f32 %v2862, %v2863
  %v2865 = vrot.slane %v2864, 2
  %v2866 = vadd.f32 %v2864, %v2865
  %v2867 = vrot.slane %v2866, 1
  %v2868 = vadd.f32 %v2866, %v2867
  %v2869 = vld [vmem:[#allocation2] sm:$0x1]
  %2871 = vset.pattern.permute.xlu0 0
  %2872 = vperm.xlu0 %2871, %v2869
  %v2873 = vpop.permute.xlu0 %2872
  %v2875 = vperm.slane %v2873, 0
  %v2876 = vadd.f32 %v2868, %v2875
  %v2877 = vtanh.pop %v2876
  %vm2878 = vcmask 57344
  %2879 = vst.msk [vmem:[%s7] sm:$0x1] %vm2878, %v2877
  // Predicated region
  $region30: #{deterministic_policy_forward.1} parent=0 // pred_check
    _
  $region31: #{deterministic_policy_forward.1} parent=0 // pred_check_branch
    %2881 = sbr.rel (0) target = $region33
  $region32: #{deterministic_policy_forward.1} parent=0 // pred_region
    _
  $region33: #{deterministic_policy_forward.1} parent=0 // pred_fallthru
    _
  // Predicated region
  $region34: #{deterministic_policy_forward.1} parent=0 // pred_check
    _
  $region35: #{deterministic_policy_forward.1} parent=0 // pred_check_branch
    %2883 = sbr.rel (0) target = $region37
  $region36: #{deterministic_policy_forward.1} parent=0 // pred_region
    _
  $region37: #{deterministic_policy_forward.1} parent=0 // pred_fallthru
    _

</llo_original>
